<compile_context>
chip_gen: v7x
topology: tpu7x:2x2x1
jax: 0.10.0
libtpu: 0.0.40
codegen_flags: <defaults>
</compile_context>

<pallas_src>
import functools

import jax
import jax.numpy as jnp
from jax.experimental import pallas as pl
from jax.experimental.pallas import tpu as pltpu

_EPS = 1e-24  # rsqrt(sumsq + eps) ~= F.normalize's x / max(||x||, 1e-12)


def _attention_kernel(xq_ref, xkv_ref, wq_ref, wk_ref, wv_ref, mkT_ref, mv_ref,
                      wout_ref, bout_ref, o_ref,
                      xnq_s, q_s, m_s, l_s, acc_s, oacc_s):
    """Grid = (batch, q_tile, head, kv_tile); kv_tile innermost, head next.

    xq_ref:   (1, TQ, C) f32     query tile of x
    xkv_ref:  (1, TK, C) f32     key/value tile of x
    wq_ref:   (1, C, dh) bf16    per-head q weight (g*sqrt(C) and softmax scale folded)
    wk_ref:   (1, C, dh) bf16    per-head k weight (g*sqrt(C) folded)
    wv_ref:   (1, C, dh) bf16    per-head v weight (g*sqrt(C) folded)
    mkT_ref:  (1, dh, n_mem) bf16  per-head memory keys, pre-transposed
    mv_ref:   (1, n_mem, dh) bf16  per-head memory values
    wout_ref: (1, dh, C) bf16    per-head slice of the output projection
    bout_ref: (1, C) f32         output projection bias
    o_ref:    (1, TQ, C) f32
    """
    h = pl.program_id(2)
    ki = pl.program_id(3)
    nh = pl.num_programs(2)
    nk = pl.num_programs(3)

    # --- cache the RMS-normalized query tile once per (batch, q-tile) -------
    @pl.when(jnp.logical_and(h == 0, ki == 0))
    def _():
        xq = xq_ref[0]                                            # (TQ, C) f32
        ssq = jnp.sum(xq * xq, axis=-1, keepdims=True)
        xnq_s[...] = xq * jax.lax.rsqrt(ssq + _EPS)

    # --- per-head q projection + online-softmax init from memory K/V --------
    @pl.when(ki == 0)
    def _():
        qb = jnp.dot(xnq_s[...].astype(jnp.bfloat16), wq_ref[0],
                     preferred_element_type=jnp.float32).astype(jnp.bfloat16)
        q_s[...] = qb                                             # (TQ, dh)
        s_mem = jnp.dot(qb, mkT_ref[0],
                        preferred_element_type=jnp.float32)       # (TQ, n_mem)
        m0 = jnp.max(s_mem, axis=-1, keepdims=True)
        p = jnp.exp(s_mem - m0)
        m_s[...] = m0
        l_s[...] = jnp.sum(p, axis=-1, keepdims=True)
        acc_s[...] = jnp.dot(p.astype(jnp.bfloat16), mv_ref[0],
                             preferred_element_type=jnp.float32)  # (TQ, dh)

    # --- local K/V tile: RMSNorm + projections + online-softmax update ------
    xkv = xkv_ref[0]                                              # (TK, C) f32
    ssq = jnp.sum(xkv * xkv, axis=-1, keepdims=True)
    xnkv = (xkv * jax.lax.rsqrt(ssq + _EPS)).astype(jnp.bfloat16)
    k = jnp.dot(xnkv, wk_ref[0], preferred_element_type=jnp.float32).astype(jnp.bfloat16)
    v = jnp.dot(xnkv, wv_ref[0], preferred_element_type=jnp.float32).astype(jnp.bfloat16)

    # q . k^T without materializing a transpose (contract on dim_head).
    s = jax.lax.dot_general(q_s[...], k, (((1,), (1,)), ((), ())),
                            preferred_element_type=jnp.float32)    # (TQ, TK)
    m_prev = m_s[...]
    m_new = jnp.maximum(m_prev, jnp.max(s, axis=-1, keepdims=True))
    alpha = jnp.exp(m_prev - m_new)
    p = jnp.exp(s - m_new)
    l_s[...] = alpha * l_s[...] + jnp.sum(p, axis=-1, keepdims=True)
    acc_s[...] = alpha * acc_s[...] + jnp.dot(p.astype(jnp.bfloat16), v,
                                              preferred_element_type=jnp.float32)
    m_s[...] = m_new

    # --- finalize head, accumulate output projection across heads -----------
    @pl.when(ki == nk - 1)
    def _():
        out_h = acc_s[...] * pl.reciprocal(l_s[...], approx=True)  # (TQ, dh) f32
        y = jnp.dot(out_h.astype(jnp.bfloat16), wout_ref[0],
                    preferred_element_type=jnp.float32)            # (TQ, C)

        @pl.when(h == 0)
        def _():
            oacc_s[...] = y + bout_ref[...]

        @pl.when(h > 0)
        def _():
            oacc_s[...] = oacc_s[...] + y

        @pl.when(h == nh - 1)
        def _():
            o_ref[0] = oacc_s[...]


@functools.partial(jax.jit, static_argnames=("heads", "dim_head", "q_tile", "kv_tile"))
def attention_forward(x_nchw, params, *, heads, dim_head, q_tile=256, kv_tile=256):
    """x_nchw: (B, C, H, W) float32. Returns (B, C, H, W)."""
    g, wqkv_t, mk, mv, wout_t, bout = params
    B, C, H, W = x_nchw.shape
    N = H * W
    hid = heads * dim_head
    n_mem = mk.shape[1]
    scale = dim_head ** -0.5

    TQ = N if N <= q_tile else q_tile
    TK = N if N <= kv_tile else kv_tile
    assert N % TQ == 0 and N % TK == 0, "spatial size must divide the tile sizes"

    # NCHW -> (B, N, C) channels-last, spatial flattened.
    x = jnp.transpose(x_nchw, (0, 2, 3, 1)).reshape(B, N, C).astype(jnp.float32)

    # Fold RMSNorm gain * sqrt(C) into the projection-weight rows and the softmax
    # scale into the q weight -> kernel only does the rsqrt normalization.
    gcol = g.reshape(C, 1).astype(jnp.float32) * (C ** 0.5)
    wqkv_eff = wqkv_t.astype(jnp.float32) * gcol                       # (C, 3*hid)

    def _per_head(wmat):                                               # (C, hid) -> (heads, C, dh)
        return jnp.transpose(wmat.reshape(C, heads, dim_head), (1, 0, 2))

    wq3 = (_per_head(wqkv_eff[:, 0:hid]) * scale).astype(jnp.bfloat16)
    wk3 = _per_head(wqkv_eff[:, hid:2 * hid]).astype(jnp.bfloat16)
    wv3 = _per_head(wqkv_eff[:, 2 * hid:3 * hid]).astype(jnp.bfloat16)
    wout3 = wout_t.astype(jnp.float32).reshape(heads, dim_head, C).astype(jnp.bfloat16)
    mkT = jnp.transpose(mk, (0, 2, 1)).astype(jnp.bfloat16)            # (heads, dh, n_mem)
    mv_b = mv.astype(jnp.bfloat16)                                     # (heads, n_mem, dh)
    bout2 = bout.reshape(1, C).astype(jnp.float32)

    grid = (B, N // TQ, heads, N // TK)

    out = pl.pallas_call(
        _attention_kernel,
        out_shape=jax.ShapeDtypeStruct((B, N, C), jnp.float32),
        grid_spec=pltpu.PrefetchScalarGridSpec(
            num_scalar_prefetch=0,
            grid=grid,
            in_specs=[
                pl.BlockSpec((1, TQ, C), lambda b, qi, h, ki: (b, qi, 0)),           # x (q tile)
                pl.BlockSpec((1, TK, C), lambda b, qi, h, ki: (b, ki, 0)),           # x (kv tile)
                pl.BlockSpec((1, C, dim_head), lambda b, qi, h, ki: (h, 0, 0)),      # Wq per head
                pl.BlockSpec((1, C, dim_head), lambda b, qi, h, ki: (h, 0, 0)),      # Wk per head
                pl.BlockSpec((1, C, dim_head), lambda b, qi, h, ki: (h, 0, 0)),      # Wv per head
                pl.BlockSpec((1, dim_head, n_mem), lambda b, qi, h, ki: (h, 0, 0)),  # mem K^T
                pl.BlockSpec((1, n_mem, dim_head), lambda b, qi, h, ki: (h, 0, 0)),  # mem V
                pl.BlockSpec((1, dim_head, C), lambda b, qi, h, ki: (h, 0, 0)),      # Wout per head
                pl.BlockSpec((1, C), lambda b, qi, h, ki: (0, 0)),                   # bias
            ],
            out_specs=pl.BlockSpec((1, TQ, C), lambda b, qi, h, ki: (b, qi, 0)),
            scratch_shapes=[
                pltpu.VMEM((TQ, C), jnp.float32),           # normalized query tile
                pltpu.VMEM((TQ, dim_head), jnp.bfloat16),   # per-head q
                pltpu.VMEM((TQ, 1), jnp.float32),           # running max
                pltpu.VMEM((TQ, 1), jnp.float32),           # running denominator
                pltpu.VMEM((TQ, dim_head), jnp.float32),    # attention accumulator
                pltpu.VMEM((TQ, C), jnp.float32),           # output accumulator (over heads)
            ],
        ),
        compiler_params=pltpu.CompilerParams(
            dimension_semantics=("parallel", "parallel", "arbitrary", "arbitrary"),
            vmem_limit_bytes=32 * 1024 * 1024,
        ),
    )(x, x, wq3, wk3, wv3, mkT, mv_b, wout3, bout2)

    # (B, N, C) -> NCHW
    return jnp.transpose(out.reshape(B, H, W, C), (0, 3, 1, 2))


def init_params(key, *, dim, heads, dim_head, n_mem):
    hid = heads * dim_head
    k1, k2, k3, k4 = jax.random.split(key, 4)
    g = jnp.ones((1, dim), jnp.float32)                                   # RMSNorm gain
    # to_qkv: Conv2d(dim -> 3*hid, 1x1, no bias); stored transposed (dim, 3*hid)
    wqkv_t = 0.02 * jax.random.normal(k1, (dim, 3 * hid), jnp.float32)
    # memory_key_values: randn(2, heads, n_mem, dim_head)
    mkv = jax.random.normal(k2, (2, heads, n_mem, dim_head), jnp.float32)
    mk, mv = mkv[0], mkv[1]
    # to_out: Conv2d(hid -> dim, 1x1, bias); stored transposed (hid, dim)
    wout_t = 0.02 * jax.random.normal(k3, (hid, dim), jnp.float32)
    bout = 0.01 * jax.random.normal(k4, (1, dim), jnp.float32)
    return (g, wqkv_t, mk, mv, wout_t, bout)


def _reference(x_nchw, params, *, heads, dim_head):
    """Pure-JAX f32 reference matching the PyTorch module's forward."""
    g, wqkv_t, mk, mv, wout_t, bout = params
    B, C, H, W = x_nchw.shape
    N = H * W
    hid = heads * dim_head
    scale = dim_head ** -0.5
    x = jnp.transpose(x_nchw, (0, 2, 3, 1)).reshape(B, N, C)
    l2 = jnp.sqrt(jnp.sum(x * x, axis=-1, keepdims=True))
    xn = x / jnp.maximum(l2, 1e-12) * (C ** 0.5) * g.reshape(1, 1, C)
    qkv = jnp.einsum("bnc,cd->bnd", xn, wqkv_t)
    q, k, v = qkv[..., :hid], qkv[..., hid:2 * hid], qkv[..., 2 * hid:]

    def split(t):  # (B, N, hid) -> (B, heads, N, dh)
        return jnp.transpose(t.reshape(B, N, heads, dim_head), (0, 2, 1, 3))

    q, k, v = split(q), split(k), split(v)
    mk_b = jnp.broadcast_to(mk[None], (B,) + mk.shape)
    mv_b = jnp.broadcast_to(mv[None], (B,) + mv.shape)
    k = jnp.concatenate([mk_b, k], axis=2)
    v = jnp.concatenate([mv_b, v], axis=2)
    s = jnp.einsum("bhqd,bhkd->bhqk", q, k) * scale
    p = jax.nn.softmax(s, axis=-1)
    o = jnp.einsum("bhqk,bhkd->bhqd", p, v)
    o = jnp.transpose(o, (0, 2, 1, 3)).reshape(B, N, hid)
    y = jnp.einsum("bnh,hc->bnc", o, wout_t) + bout.reshape(1, 1, C)
    return jnp.transpose(y.reshape(B, H, W, C), (0, 3, 1, 2))


if __name__ == "__main__":
    # Small shapes consistent with the module defaults.
    batch, dim, height, width = 2, 8, 4, 4
    heads, dim_head, n_mem = 4, 32, 4

    key = jax.random.PRNGKey(0)
    kx, kp = jax.random.split(key)
    x = jax.random.normal(kx, (batch, dim, height, width), jnp.float32)
    params = init_params(kp, dim=dim, heads=heads, dim_head=dim_head, n_mem=n_mem)

    y = attention_forward(x, params, heads=heads, dim_head=dim_head)
    jax.block_until_ready(y)
    assert y.shape == (batch, dim, height, width), y.shape

    # Loose sanity check vs f32 reference (kernel uses bf16 MXU operands +
    # approx reciprocal, so allow a generous tolerance).
    ref = _reference(x, params, heads=heads, dim_head=dim_head)
    err = float(jnp.max(jnp.abs(y - ref)))
    tol = 1e-2 + 5e-2 * float(jnp.max(jnp.abs(ref)))
    assert err < tol, (err, tol)

    print("KERNEL_OK")
</pallas_src>

<mosaic_0001>
module attributes {stable_mosaic.version = 11 : i64} {
  func.func @_attention_kernel(%arg0: i32, %arg1: i32, %arg2: i32, %arg3: i32, %arg4: memref<1x16x8xf32, #tpu.memory_space<vmem>>, %arg5: memref<1x16x8xf32, #tpu.memory_space<vmem>>, %arg6: memref<1x8x32xbf16, #tpu.memory_space<vmem>>, %arg7: memref<1x8x32xbf16, #tpu.memory_space<vmem>>, %arg8: memref<1x8x32xbf16, #tpu.memory_space<vmem>>, %arg9: memref<1x32x4xbf16, #tpu.memory_space<vmem>>, %arg10: memref<1x4x32xbf16, #tpu.memory_space<vmem>>, %arg11: memref<1x32x8xbf16, #tpu.memory_space<vmem>>, %arg12: memref<1x8xf32, #tpu.memory_space<vmem>>, %arg13: memref<1x16x8xf32, #tpu.memory_space<vmem>>, %arg14: memref<16x8xf32, #tpu.memory_space<vmem>>, %arg15: memref<16x32xbf16, #tpu.memory_space<vmem>>, %arg16: memref<16x1xf32, #tpu.memory_space<vmem>>, %arg17: memref<16x1xf32, #tpu.memory_space<vmem>>, %arg18: memref<16x32xf32, #tpu.memory_space<vmem>>, %arg19: memref<16x8xf32, #tpu.memory_space<vmem>>) attributes {dimension_semantics = [#tpu.dimension_semantics<parallel>, #tpu.dimension_semantics<parallel>, #tpu.dimension_semantics<arbitrary>, #tpu.dimension_semantics<arbitrary>], iteration_bounds = array<i64: 2, 1, 4, 1>, scalar_prefetch = 0 : i64, scratch_operands = 6 : i64, tpu.core_type = #tpu.core_type<tc>, window_params = [{transform_indices = @transform_0, window_bounds = array<i64: 1, 16, 8>}, {transform_indices = @transform_1, window_bounds = array<i64: 1, 16, 8>}, {transform_indices = @transform_2, window_bounds = array<i64: 1, 8, 32>}, {transform_indices = @transform_3, window_bounds = array<i64: 1, 8, 32>}, {transform_indices = @transform_4, window_bounds = array<i64: 1, 8, 32>}, {transform_indices = @transform_5, window_bounds = array<i64: 1, 32, 4>}, {transform_indices = @transform_6, window_bounds = array<i64: 1, 4, 32>}, {transform_indices = @transform_7, window_bounds = array<i64: 1, 32, 8>}, {pipeline_mode = #tpu.pipeline_mode<synchronous>, transform_indices = @transform_8, window_bounds = array<i64: 1, 8>}, {transform_indices = @transform_9, window_bounds = array<i64: 1, 16, 8>}]} {
    %c0_i32 = arith.constant 0 : i32
    %0 = arith.cmpi eq, %arg2, %c0_i32 : i32
    %c0_i32_0 = arith.constant 0 : i32
    %1 = arith.cmpi eq, %arg3, %c0_i32_0 : i32
    %2 = arith.andi %0, %1 : i1
    %3 = arith.extui %2 : i1 to i32
    %c0_i32_1 = arith.constant 0 : i32
    %4 = arith.cmpi ne, %3, %c0_i32_1 : i32
    scf.if %4 {
      %c0_35 = arith.constant 0 : index
      %c0_36 = arith.constant 0 : index
      %c0_37 = arith.constant 0 : index
      %55 = vector.load %arg4[%c0_35, %c0_36, %c0_37] : memref<1x16x8xf32, #tpu.memory_space<vmem>>, vector<1x16x8xf32>
      %56 = vector.shape_cast %55 : vector<1x16x8xf32> to vector<16x8xf32>
      %57 = arith.mulf %56, %56 : vector<16x8xf32>
      %cst_38 = arith.constant dense<0.000000e+00> : vector<16xf32>
      %58 = vector.multi_reduction <add>, %57, %cst_38 [1] : vector<16x8xf32> to vector<16xf32>
      %59 = vector.shape_cast %58 : vector<16xf32> to vector<16x1xf32>
      %cst_39 = arith.constant 1.000000e-24 : f32
      %60 = vector.broadcast %cst_39 : f32 to vector<16x1xf32>
      %61 = arith.addf %59, %60 : vector<16x1xf32>
      %62 = math.rsqrt %61 : vector<16x1xf32>
      %63 = vector.broadcast %62 : vector<16x1xf32> to vector<16x8xf32>
      %64 = arith.mulf %56, %63 : vector<16x8xf32>
      %c0_40 = arith.constant 0 : index
      %c0_41 = arith.constant 0 : index
      %65 = vector.load %arg14[%c0_40, %c0_41] : memref<16x8xf32, #tpu.memory_space<vmem>>, vector<16x8xf32>
      tpu.vector_store %arg14[%c0_40, %c0_41], %64 {strides = array<i32>} : memref<16x8xf32, #tpu.memory_space<vmem>>, vector<16x8xf32>,
    } else {
    }
    %c0_i32_2 = arith.constant 0 : i32
    %5 = arith.cmpi eq, %arg3, %c0_i32_2 : i32
    %6 = arith.extui %5 : i1 to i32
    %c0_i32_3 = arith.constant 0 : i32
    %7 = arith.cmpi ne, %6, %c0_i32_3 : i32
    scf.if %7 {
      %c0_35 = arith.constant 0 : index
      %c0_36 = arith.constant 0 : index
      %55 = vector.load %arg14[%c0_35, %c0_36] : memref<16x8xf32, #tpu.memory_space<vmem>>, vector<16x8xf32>
      %56 = arith.truncf %55 : vector<16x8xf32> to vector<16x8xbf16>
      %c0_37 = arith.constant 0 : index
      %c0_38 = arith.constant 0 : index
      %c0_39 = arith.constant 0 : index
      %57 = vector.load %arg6[%c0_37, %c0_38, %c0_39] : memref<1x8x32xbf16, #tpu.memory_space<vmem>>, vector<1x8x32xbf16>
      %58 = vector.shape_cast %57 : vector<1x8x32xbf16> to vector<8x32xbf16>
      %cst_40 = arith.constant dense<0.000000e+00> : vector<16x32xf32>
      %59 = tpu.matmul %56, %58, %cst_40 {dimension_numbers = #tpu.dot_dimension_numbers<[1], [0], [0], [1], [0, 0, 1, 1], [], []>} : vector<16x8xbf16>, vector<8x32xbf16>, vector<16x32xf32> -> vector<16x32xf32>
      %60 = arith.truncf %59 : vector<16x32xf32> to vector<16x32xbf16>
      %c0_41 = arith.constant 0 : index
      %c0_42 = arith.constant 0 : index
      %61 = vector.load %arg15[%c0_41, %c0_42] : memref<16x32xbf16, #tpu.memory_space<vmem>>, vector<16x32xbf16>
      tpu.vector_store %arg15[%c0_41, %c0_42], %60 {strides = array<i32>} : memref<16x32xbf16, #tpu.memory_space<vmem>>, vector<16x32xbf16>,
      %c0_43 = arith.constant 0 : index
      %c0_44 = arith.constant 0 : index
      %c0_45 = arith.constant 0 : index
      %62 = vector.load %arg9[%c0_43, %c0_44, %c0_45] : memref<1x32x4xbf16, #tpu.memory_space<vmem>>, vector<1x32x4xbf16>
      %63 = vector.shape_cast %62 : vector<1x32x4xbf16> to vector<32x4xbf16>
      %cst_46 = arith.constant dense<0.000000e+00> : vector<16x4xf32>
      %64 = tpu.matmul %60, %63, %cst_46 {dimension_numbers = #tpu.dot_dimension_numbers<[1], [0], [0], [1], [0, 0, 1, 1], [], []>} : vector<16x32xbf16>, vector<32x4xbf16>, vector<16x4xf32> -> vector<16x4xf32>
      %cst_47 = arith.constant dense<0xFF800000> : vector<16xf32>
      %65 = vector.multi_reduction <maximumf>, %64, %cst_47 [1] : vector<16x4xf32> to vector<16xf32>
      %66 = vector.shape_cast %65 : vector<16xf32> to vector<16x1xf32>
      %67 = vector.broadcast %66 : vector<16x1xf32> to vector<16x4xf32>
      %68 = arith.subf %64, %67 : vector<16x4xf32>
      %69 = math.exp %68 : vector<16x4xf32>
      %c0_48 = arith.constant 0 : index
      %c0_49 = arith.constant 0 : index
      %70 = vector.load %arg16[%c0_48, %c0_49] : memref<16x1xf32, #tpu.memory_space<vmem>>, vector<16x1xf32>
      tpu.vector_store %arg16[%c0_48, %c0_49], %66 {strides = array<i32>} : memref<16x1xf32, #tpu.memory_space<vmem>>, vector<16x1xf32>,
      %cst_50 = arith.constant dense<0.000000e+00> : vector<16xf32>
      %71 = vector.multi_reduction <add>, %69, %cst_50 [1] : vector<16x4xf32> to vector<16xf32>
      %72 = vector.shape_cast %71 : vector<16xf32> to vector<16x1xf32>
      %c0_51 = arith.constant 0 : index
      %c0_52 = arith.constant 0 : index
      %73 = vector.load %arg17[%c0_51, %c0_52] : memref<16x1xf32, #tpu.memory_space<vmem>>, vector<16x1xf32>
      tpu.vector_store %arg17[%c0_51, %c0_52], %72 {strides = array<i32>} : memref<16x1xf32, #tpu.memory_space<vmem>>, vector<16x1xf32>,
      %74 = arith.truncf %69 : vector<16x4xf32> to vector<16x4xbf16>
      %c0_53 = arith.constant 0 : index
      %c0_54 = arith.constant 0 : index
      %c0_55 = arith.constant 0 : index
      %75 = vector.load %arg10[%c0_53, %c0_54, %c0_55] : memref<1x4x32xbf16, #tpu.memory_space<vmem>>, vector<1x4x32xbf16>
      %76 = vector.shape_cast %75 : vector<1x4x32xbf16> to vector<4x32xbf16>
      %cst_56 = arith.constant dense<0.000000e+00> : vector<16x32xf32>
      %77 = tpu.matmul %74, %76, %cst_56 {dimension_numbers = #tpu.dot_dimension_numbers<[1], [0], [0], [1], [0, 0, 1, 1], [], []>} : vector<16x4xbf16>, vector<4x32xbf16>, vector<16x32xf32> -> vector<16x32xf32>
      %c0_57 = arith.constant 0 : index
      %c0_58 = arith.constant 0 : index
      %78 = vector.load %arg18[%c0_57, %c0_58] : memref<16x32xf32, #tpu.memory_space<vmem>>, vector<16x32xf32>
      tpu.vector_store %arg18[%c0_57, %c0_58], %77 {strides = array<i32>} : memref<16x32xf32, #tpu.memory_space<vmem>>, vector<16x32xf32>,
    } else {
    }
    %c0 = arith.constant 0 : index
    %c0_4 = arith.constant 0 : index
    %c0_5 = arith.constant 0 : index
    %8 = vector.load %arg5[%c0, %c0_4, %c0_5] : memref<1x16x8xf32, #tpu.memory_space<vmem>>, vector<1x16x8xf32>
    %9 = vector.shape_cast %8 : vector<1x16x8xf32> to vector<16x8xf32>
    %10 = arith.mulf %9, %9 : vector<16x8xf32>
    %cst = arith.constant dense<0.000000e+00> : vector<16xf32>
    %11 = vector.multi_reduction <add>, %10, %cst [1] : vector<16x8xf32> to vector<16xf32>
    %12 = vector.shape_cast %11 : vector<16xf32> to vector<16x1xf32>
    %cst_6 = arith.constant 1.000000e-24 : f32
    %13 = vector.broadcast %cst_6 : f32 to vector<16x1xf32>
    %14 = arith.addf %12, %13 : vector<16x1xf32>
    %15 = math.rsqrt %14 : vector<16x1xf32>
    %16 = vector.broadcast %15 : vector<16x1xf32> to vector<16x8xf32>
    %17 = arith.mulf %9, %16 : vector<16x8xf32>
    %18 = arith.truncf %17 : vector<16x8xf32> to vector<16x8xbf16>
    %c0_7 = arith.constant 0 : index
    %c0_8 = arith.constant 0 : index
    %c0_9 = arith.constant 0 : index
    %19 = vector.load %arg7[%c0_7, %c0_8, %c0_9] : memref<1x8x32xbf16, #tpu.memory_space<vmem>>, vector<1x8x32xbf16>
    %20 = vector.shape_cast %19 : vector<1x8x32xbf16> to vector<8x32xbf16>
    %cst_10 = arith.constant dense<0.000000e+00> : vector<16x32xf32>
    %21 = tpu.matmul %18, %20, %cst_10 {dimension_numbers = #tpu.dot_dimension_numbers<[1], [0], [0], [1], [0, 0, 1, 1], [], []>} : vector<16x8xbf16>, vector<8x32xbf16>, vector<16x32xf32> -> vector<16x32xf32>
    %22 = arith.truncf %21 : vector<16x32xf32> to vector<16x32xbf16>
    %c0_11 = arith.constant 0 : index
    %c0_12 = arith.constant 0 : index
    %c0_13 = arith.constant 0 : index
    %23 = vector.load %arg8[%c0_11, %c0_12, %c0_13] : memref<1x8x32xbf16, #tpu.memory_space<vmem>>, vector<1x8x32xbf16>
    %24 = vector.shape_cast %23 : vector<1x8x32xbf16> to vector<8x32xbf16>
    %cst_14 = arith.constant dense<0.000000e+00> : vector<16x32xf32>
    %25 = tpu.matmul %18, %24, %cst_14 {dimension_numbers = #tpu.dot_dimension_numbers<[1], [0], [0], [1], [0, 0, 1, 1], [], []>} : vector<16x8xbf16>, vector<8x32xbf16>, vector<16x32xf32> -> vector<16x32xf32>
    %26 = arith.truncf %25 : vector<16x32xf32> to vector<16x32xbf16>
    %c0_15 = arith.constant 0 : index
    %c0_16 = arith.constant 0 : index
    %27 = vector.load %arg15[%c0_15, %c0_16] : memref<16x32xbf16, #tpu.memory_space<vmem>>, vector<16x32xbf16>
    %cst_17 = arith.constant dense<0.000000e+00> : vector<16x16xf32>
    %28 = tpu.matmul %27, %22, %cst_17 {dimension_numbers = #tpu.dot_dimension_numbers<[1], [1], [0], [0], [0, 0, 1, 0], [], []>} : vector<16x32xbf16>, vector<16x32xbf16>, vector<16x16xf32> -> vector<16x16xf32>
    %c0_18 = arith.constant 0 : index
    %c0_19 = arith.constant 0 : index
    %29 = vector.load %arg16[%c0_18, %c0_19] : memref<16x1xf32, #tpu.memory_space<vmem>>, vector<16x1xf32>
    %cst_20 = arith.constant dense<0xFF800000> : vector<16xf32>
    %30 = vector.multi_reduction <maximumf>, %28, %cst_20 [1] : vector<16x16xf32> to vector<16xf32>
    %31 = vector.shape_cast %30 : vector<16xf32> to vector<16x1xf32>
    %32 = arith.maximumf %29, %31 : vector<16x1xf32>
    %33 = arith.subf %29, %32 : vector<16x1xf32>
    %34 = math.exp %33 : vector<16x1xf32>
    %35 = vector.broadcast %32 : vector<16x1xf32> to vector<16x16xf32>
    %36 = arith.subf %28, %35 : vector<16x16xf32>
    %37 = math.exp %36 : vector<16x16xf32>
    %c0_21 = arith.constant 0 : index
    %c0_22 = arith.constant 0 : index
    %38 = vector.load %arg17[%c0_21, %c0_22] : memref<16x1xf32, #tpu.memory_space<vmem>>, vector<16x1xf32>
    %39 = arith.mulf %34, %38 : vector<16x1xf32>
    %cst_23 = arith.constant dense<0.000000e+00> : vector<16xf32>
    %40 = vector.multi_reduction <add>, %37, %cst_23 [1] : vector<16x16xf32> to vector<16xf32>
    %41 = vector.shape_cast %40 : vector<16xf32> to vector<16x1xf32>
    %42 = arith.addf %39, %41 : vector<16x1xf32>
    %c0_24 = arith.constant 0 : index
    %c0_25 = arith.constant 0 : index
    %43 = vector.load %arg17[%c0_24, %c0_25] : memref<16x1xf32, #tpu.memory_space<vmem>>, vector<16x1xf32>
    tpu.vector_store %arg17[%c0_24, %c0_25], %42 {strides = array<i32>} : memref<16x1xf32, #tpu.memory_space<vmem>>, vector<16x1xf32>,
    %c0_26 = arith.constant 0 : index
    %c0_27 = arith.constant 0 : index
    %44 = vector.load %arg18[%c0_26, %c0_27] : memref<16x32xf32, #tpu.memory_space<vmem>>, vector<16x32xf32>
    %45 = vector.broadcast %34 : vector<16x1xf32> to vector<16x32xf32>
    %46 = arith.mulf %45, %44 : vector<16x32xf32>
    %47 = arith.truncf %37 : vector<16x16xf32> to vector<16x16xbf16>
    %cst_28 = arith.constant dense<0.000000e+00> : vector<16x32xf32>
    %48 = tpu.matmul %47, %26, %cst_28 {dimension_numbers = #tpu.dot_dimension_numbers<[1], [0], [0], [1], [0, 0, 1, 1], [], []>} : vector<16x16xbf16>, vector<16x32xbf16>, vector<16x32xf32> -> vector<16x32xf32>
    %49 = arith.addf %46, %48 : vector<16x32xf32>
    %c0_29 = arith.constant 0 : index
    %c0_30 = arith.constant 0 : index
    %50 = vector.load %arg18[%c0_29, %c0_30] : memref<16x32xf32, #tpu.memory_space<vmem>>, vector<16x32xf32>
    tpu.vector_store %arg18[%c0_29, %c0_30], %49 {strides = array<i32>} : memref<16x32xf32, #tpu.memory_space<vmem>>, vector<16x32xf32>,
    %c0_31 = arith.constant 0 : index
    %c0_32 = arith.constant 0 : index
    %51 = vector.load %arg16[%c0_31, %c0_32] : memref<16x1xf32, #tpu.memory_space<vmem>>, vector<16x1xf32>
    tpu.vector_store %arg16[%c0_31, %c0_32], %32 {strides = array<i32>} : memref<16x1xf32, #tpu.memory_space<vmem>>, vector<16x1xf32>,
    %c0_i32_33 = arith.constant 0 : i32
    %52 = arith.cmpi eq, %arg3, %c0_i32_33 : i32
    %53 = arith.extui %52 : i1 to i32
    %c0_i32_34 = arith.constant 0 : i32
    %54 = arith.cmpi ne, %53, %c0_i32_34 : i32
    scf.if %54 {
      %c0_35 = arith.constant 0 : index
      %c0_36 = arith.constant 0 : index
      %55 = vector.load %arg18[%c0_35, %c0_36] : memref<16x32xf32, #tpu.memory_space<vmem>>, vector<16x32xf32>
      %c0_37 = arith.constant 0 : index
      %c0_38 = arith.constant 0 : index
      %56 = vector.load %arg17[%c0_37, %c0_38] : memref<16x1xf32, #tpu.memory_space<vmem>>, vector<16x1xf32>
      %57 = tpu.reciprocal %56 {approx = true} : vector<16x1xf32> -> vector<16x1xf32>
      %58 = vector.broadcast %57 : vector<16x1xf32> to vector<16x32xf32>
      %59 = arith.mulf %55, %58 : vector<16x32xf32>
      %60 = arith.truncf %59 : vector<16x32xf32> to vector<16x32xbf16>
      %c0_39 = arith.constant 0 : index
      %c0_40 = arith.constant 0 : index
      %c0_41 = arith.constant 0 : index
      %61 = vector.load %arg11[%c0_39, %c0_40, %c0_41] : memref<1x32x8xbf16, #tpu.memory_space<vmem>>, vector<1x32x8xbf16>
      %62 = vector.shape_cast %61 : vector<1x32x8xbf16> to vector<32x8xbf16>
      %cst_42 = arith.constant dense<0.000000e+00> : vector<16x8xf32>
      %63 = tpu.matmul %60, %62, %cst_42 {dimension_numbers = #tpu.dot_dimension_numbers<[1], [0], [0], [1], [0, 0, 1, 1], [], []>} : vector<16x32xbf16>, vector<32x8xbf16>, vector<16x8xf32> -> vector<16x8xf32>
      %c0_i32_43 = arith.constant 0 : i32
      %64 = arith.cmpi eq, %arg2, %c0_i32_43 : i32
      %65 = arith.extui %64 : i1 to i32
      %c0_i32_44 = arith.constant 0 : i32
      %66 = arith.cmpi ne, %65, %c0_i32_44 : i32
      scf.if %66 {
        %c0_48 = arith.constant 0 : index
        %c0_49 = arith.constant 0 : index
        %73 = vector.load %arg12[%c0_48, %c0_49] : memref<1x8xf32, #tpu.memory_space<vmem>>, vector<1x8xf32>
        %74 = vector.broadcast %73 : vector<1x8xf32> to vector<16x8xf32>
        %75 = arith.addf %63, %74 : vector<16x8xf32>
        %c0_50 = arith.constant 0 : index
        %c0_51 = arith.constant 0 : index
        %76 = vector.load %arg19[%c0_50, %c0_51] : memref<16x8xf32, #tpu.memory_space<vmem>>, vector<16x8xf32>
        tpu.vector_store %arg19[%c0_50, %c0_51], %75 {strides = array<i32>} : memref<16x8xf32, #tpu.memory_space<vmem>>, vector<16x8xf32>,
      } else {
      }
      %c0_i32_45 = arith.constant 0 : i32
      %67 = arith.cmpi sgt, %arg2, %c0_i32_45 : i32
      %68 = arith.extui %67 : i1 to i32
      %c0_i32_46 = arith.constant 0 : i32
      %69 = arith.cmpi ne, %68, %c0_i32_46 : i32
      scf.if %69 {
        %c0_48 = arith.constant 0 : index
        %c0_49 = arith.constant 0 : index
        %73 = vector.load %arg19[%c0_48, %c0_49] : memref<16x8xf32, #tpu.memory_space<vmem>>, vector<16x8xf32>
        %74 = arith.addf %73, %63 : vector<16x8xf32>
        %c0_50 = arith.constant 0 : index
        %c0_51 = arith.constant 0 : index
        %75 = vector.load %arg19[%c0_50, %c0_51] : memref<16x8xf32, #tpu.memory_space<vmem>>, vector<16x8xf32>
        tpu.vector_store %arg19[%c0_50, %c0_51], %74 {strides = array<i32>} : memref<16x8xf32, #tpu.memory_space<vmem>>, vector<16x8xf32>,
      } else {
      }
      %c3_i32 = arith.constant 3 : i32
      %70 = arith.cmpi eq, %arg2, %c3_i32 : i32
      %71 = arith.extui %70 : i1 to i32
      %c0_i32_47 = arith.constant 0 : i32
      %72 = arith.cmpi ne, %71, %c0_i32_47 : i32
      scf.if %72 {
        %c0_48 = arith.constant 0 : index
        %c0_49 = arith.constant 0 : index
        %73 = vector.load %arg19[%c0_48, %c0_49] : memref<16x8xf32, #tpu.memory_space<vmem>>, vector<16x8xf32>
        %c0_50 = arith.constant 0 : index
        %c0_51 = arith.constant 0 : index
        %c0_52 = arith.constant 0 : index
        %74 = vector.load %arg13[%c0_50, %c0_51, %c0_52] : memref<1x16x8xf32, #tpu.memory_space<vmem>>, vector<1x16x8xf32>
        %75 = vector.shape_cast %74 : vector<1x16x8xf32> to vector<16x8xf32>
        %76 = vector.shape_cast %73 : vector<16x8xf32> to vector<1x16x8xf32>
        tpu.vector_store %arg13[%c0_50, %c0_51, %c0_52], %76 {strides = array<i32>} : memref<1x16x8xf32, #tpu.memory_space<vmem>>, vector<1x16x8xf32>,
      } else {
      }
    } else {
    }
    return
  }
  func.func @transform_0(%arg0: i32, %arg1: i32, %arg2: i32, %arg3: i32) -> (i32, i32, i32) {
    %c0_i32 = arith.constant 0 : i32
    %c0_i32_0 = arith.constant 0 : i32
    return %arg0, %arg1, %c0_i32 : i32, i32, i32
  }
  func.func @transform_1(%arg0: i32, %arg1: i32, %arg2: i32, %arg3: i32) -> (i32, i32, i32) {
    %c0_i32 = arith.constant 0 : i32
    %c0_i32_0 = arith.constant 0 : i32
    return %arg0, %arg3, %c0_i32 : i32, i32, i32
  }
  func.func @transform_2(%arg0: i32, %arg1: i32, %arg2: i32, %arg3: i32) -> (i32, i32, i32) {
    %c0_i32 = arith.constant 0 : i32
    %c0_i32_0 = arith.constant 0 : i32
    %c0_i32_1 = arith.constant 0 : i32
    return %arg2, %c0_i32, %c0_i32_0 : i32, i32, i32
  }
  func.func @transform_3(%arg0: i32, %arg1: i32, %arg2: i32, %arg3: i32) -> (i32, i32, i32) {
    %c0_i32 = arith.constant 0 : i32
    %c0_i32_0 = arith.constant 0 : i32
    %c0_i32_1 = arith.constant 0 : i32
    return %arg2, %c0_i32, %c0_i32_0 : i32, i32, i32
  }
  func.func @transform_4(%arg0: i32, %arg1: i32, %arg2: i32, %arg3: i32) -> (i32, i32, i32) {
    %c0_i32 = arith.constant 0 : i32
    %c0_i32_0 = arith.constant 0 : i32
    %c0_i32_1 = arith.constant 0 : i32
    return %arg2, %c0_i32, %c0_i32_0 : i32, i32, i32
  }
  func.func @transform_5(%arg0: i32, %arg1: i32, %arg2: i32, %arg3: i32) -> (i32, i32, i32) {
    %c0_i32 = arith.constant 0 : i32
    %c0_i32_0 = arith.constant 0 : i32
    %c0_i32_1 = arith.constant 0 : i32
    return %arg2, %c0_i32, %c0_i32_0 : i32, i32, i32
  }
  func.func @transform_6(%arg0: i32, %arg1: i32, %arg2: i32, %arg3: i32) -> (i32, i32, i32) {
    %c0_i32 = arith.constant 0 : i32
    %c0_i32_0 = arith.constant 0 : i32
    %c0_i32_1 = arith.constant 0 : i32
    return %arg2, %c0_i32, %c0_i32_0 : i32, i32, i32
  }
  func.func @transform_7(%arg0: i32, %arg1: i32, %arg2: i32, %arg3: i32) -> (i32, i32, i32) {
    %c0_i32 = arith.constant 0 : i32
    %c0_i32_0 = arith.constant 0 : i32
    %c0_i32_1 = arith.constant 0 : i32
    return %arg2, %c0_i32, %c0_i32_0 : i32, i32, i32
  }
  func.func @transform_8(%arg0: i32, %arg1: i32, %arg2: i32, %arg3: i32) -> (i32, i32) {
    %c0_i32 = arith.constant 0 : i32
    %c0_i32_0 = arith.constant 0 : i32
    %c0_i32_1 = arith.constant 0 : i32
    return %c0_i32, %c0_i32_0 : i32, i32
  }
  func.func @transform_9(%arg0: i32, %arg1: i32, %arg2: i32, %arg3: i32) -> (i32, i32, i32) {
    %c0_i32 = arith.constant 0 : i32
    %c0_i32_0 = arith.constant 0 : i32
    return %arg0, %arg1, %c0_i32 : i32, i32, i32
  }
}

</mosaic_0001>

<llo_original>
// kernel: attention_forward.1
$region0: #{attention_forward.1}
  #allocation0 [shape = 'u32[]', space=smem, size = 0x4, offset = 0x4, fixed_abs, tag = 'smem constant byte address 0x4 - core index']
  #allocation1 [shape = 'u32[144,128]{1,0:T(1,128)}', space=vmem, size = 0x12000, scoped, tag = 'internal scratch']
  #allocation2 [shape = 'f32[16,8]{1,0:T(8,128)}', space=vmem, size = 0x2000, scoped, tag = 'scratch operand']
  #allocation3 [shape = 'bf16[16,32]{1,0:T(16,128)(2,1)}', space=vmem, size = 0x1000, scoped, tag = 'scratch operand']
  #allocation4 [shape = 'f32[16,1]{1,0:T(8,128)}', space=vmem, size = 0x2000, scoped, tag = 'scratch operand']
  #allocation5 [shape = 'f32[16,1]{1,0:T(8,128)}', space=vmem, size = 0x2000, scoped, tag = 'scratch operand']
  #allocation6 [shape = 'f32[16,32]{1,0:T(8,128)}', space=vmem, size = 0x2000, scoped, tag = 'scratch operand']
  #allocation7 [shape = 'f32[16,8]{1,0:T(8,128)}', space=vmem, size = 0x2000, scoped, tag = 'scratch operand']
  %s0 = inlined_call_operand.vmem [shape: f32[2,16,8], index: 0, kind: input, shape index: {}, may-alias: {0,1}]
  %s1 = inlined_call_operand.vmem [shape: f32[2,16,8], index: 1, kind: input, shape index: {}, may-alias: {0,1}]
  %s2 = inlined_call_operand.vmem [shape: bf16[4,8,32], index: 2, kind: input, shape index: {}]
  %s3 = inlined_call_operand.vmem [shape: bf16[4,8,32], index: 3, kind: input, shape index: {}]
  %s4 = inlined_call_operand.vmem [shape: bf16[4,8,32], index: 4, kind: input, shape index: {}]
  %s5 = inlined_call_operand.vmem [shape: bf16[4,32,4], index: 5, kind: input, shape index: {}]
  %s6 = inlined_call_operand.vmem [shape: bf16[4,4,32], index: 6, kind: input, shape index: {}]
  %s7 = inlined_call_operand.vmem [shape: bf16[4,32,8], index: 7, kind: input, shape index: {}]
  %s8 = inlined_call_operand.vmem [shape: f32[1,8], index: 8, kind: input, shape index: {}]
  %s9 = inlined_call_operand.hbm [shape: f32[2,16,8], index: 9, kind: output, shape index: {}]
  %s10 = sld [smem:[#allocation0]]
  $region93: #{attention_forward.1} parent=0
    _
  %s12 = ssub.s32 1, %s10
  %s13 = scalar_select 0, %s12, %s10
  $region1: #{attention_forward.1} parent=0
    #allocation8 [shape = 'u8[16384]{0}', space=vmem, size = 0x4000, scoped, tag = 'output window, operand 0']
    #allocation9 [shape = 's32[2]{0}', space=sflag, size = 0x8, scoped, tag = 'scoped memory for attention_forward.1']
    %14 = vsyncpa [#allocation9], 0
    %s15 = scalar_lea.sflag [#allocation9], 1
    %16 = vsyncpa %s15, 0
    loop: start=0, step=1, limit=10
    $region2: #{attention_forward.1} parent=1 // loop_pre_header
      _
    $region3: #{attention_forward.1} parent=1 // loop_header
      %s18 = sphi 0, %s22
      %p19 = scmp.ge.s32.totalorder %s18, 10
      %s25 = sphi 0, %s51
      %s26 = sphi 0, %s47
      %s27 = sphi 0, %s43
      %s28 = sphi 0, %s39
      %s29 = sphi 0, %s25
      %s30 = sphi 0, %s26
      %s31 = sphi 0, %s27
      %s32 = sphi 0, %s28
      %s33 = sphi 0, %s29
      %s34 = sphi 0, %s30
      %s35 = sphi 0, %s31
      %s36 = sphi 0, %s32
      %s56 = sphi 0, %s58
      %s59 = sphi 0, %s56
      %s60 = sphi 0, %s59
      %s76 = sphi 0, %s60
      %s84 = sphi 0, %s86
      %s87 = sphi 0, %s84
      %s88 = sphi 0, %s87
      %s104 = sphi 0, %s88
      %s110 = sphi 0, %s112
      %s113 = sphi 0, %s110
      %s114 = sphi 0, %s113
      %s130 = sphi 0, %s114
      %s136 = sphi 0, %s138
      %s139 = sphi 0, %s136
      %s140 = sphi 0, %s139
      %s156 = sphi 0, %s140
      %s162 = sphi 0, %s164
      %s165 = sphi 0, %s162
      %s166 = sphi 0, %s165
      %s182 = sphi 0, %s166
      %s188 = sphi 0, %s190
      %s191 = sphi 0, %s188
      %s192 = sphi 0, %s191
      %s208 = sphi 0, %s192
      %s214 = sphi 0, %s216
      %s217 = sphi 0, %s214
      %s218 = sphi 0, %s217
      %s234 = sphi 0, %s218
      %s240 = sphi 0, %s242
      %s243 = sphi 0, %s240
      %s244 = sphi 0, %s243
      %s260 = sphi 0, %s244
      %s264 = sphi 0, %s264
      %s266 = sphi 0, %s264
      %s267 = sphi 0, %s266
      %s281 = sphi 0, %s267
      %s289 = sphi 0, %s291
      %s292 = sphi 0, %s289
      %s293 = sphi 0, %s292
      %s309 = sphi 0, %s293
    $region4: #{attention_forward.1} parent=1 // loop_header_branch
      %21 = sbr.rel (%p19) target = $region8
    $region5: #{attention_forward.1} parent=1 // loop_body
      %s23 = ssub.s32 %s18, 1
      %s24 = ssub.s32 %s18, 2
      %s37 = sadd.s32 1, %s28
      %p38 = scmp.ge.s32.totalorder %s37, 1
      %s39 = scalar_select %p38, 0, %s37
      %s40 = sadd.s32 1, %s27
      %s41 = scalar_select %p38, %s40, %s27
      %p42 = scmp.ge.s32.totalorder %s41, 4
      %s43 = scalar_select %p42, 0, %s41
      %s44 = sadd.s32 1, %s26
      %s45 = scalar_select %p42, %s44, %s26
      %p46 = scmp.ge.s32.totalorder %s45, 1
      %s47 = scalar_select %p46, 0, %s45
      %s48 = sadd.s32 1, %s25
      %s49 = scalar_select %p46, %s48, %s25
      %p50 = scmp.ge.s32.totalorder %s49, 2
      %s51 = scalar_select %p50, 0, %s49
      %s52 = ssub.s32 %s25, %s51
      %s53 = ssub.s32 %s26, %s47
      %s54 = sor.u32 %s52, %s53
      %p55 = scmp.eq.s32.totalorder %s54, 0
      %s57 = sadd.s32 %s56, 1
      %s58 = scalar_select %p55, %s56, %s57
      %p61 = pneg %p55
      %p62 = scmp.eq.s32.totalorder %s18, 7
      %p63 = por %p61, %p62
      %p64 = scmp.ne.s32.totalorder %s56, %s59
      %p65 = scmp.eq.s32.totalorder %s18, 0
      %p66 = por %p64, %p65
      %p67 = scmp.ne.s32.totalorder %s56, %s59
      %p68 = scmp.eq.s32.totalorder %s23, 7
      %p69 = por %p67, %p68
      %p70 = scmp.ne.s32.totalorder %s59, %s60
      %p71 = scmp.eq.s32.totalorder %s23, 0
      %p72 = por %p70, %p71
      %p73 = scmp.ne.s32.totalorder %s59, %s60
      %p74 = scmp.eq.s32.totalorder %s24, 7
      %p75 = por %p73, %p74
      %p77 = scmp.ne.s32.totalorder %s60, %s76
      %p78 = scmp.eq.s32.totalorder %s24, 0
      %p79 = por %p77, %p78
      %s80 = ssub.s32 %s25, %s51
      %s81 = ssub.s32 %s28, %s39
      %s82 = sor.u32 %s80, %s81
      %p83 = scmp.eq.s32.totalorder %s82, 0
      %s85 = sadd.s32 %s84, 1
      %s86 = scalar_select %p83, %s84, %s85
      %p89 = pneg %p83
      %p90 = scmp.eq.s32.totalorder %s18, 7
      %p91 = por %p89, %p90
      %p92 = scmp.ne.s32.totalorder %s84, %s87
      %p93 = scmp.eq.s32.totalorder %s18, 0
      %p94 = por %p92, %p93
      %p95 = scmp.ne.s32.totalorder %s84, %s87
      %p96 = scmp.eq.s32.totalorder %s23, 7
      %p97 = por %p95, %p96
      %p98 = scmp.ne.s32.totalorder %s87, %s88
      %p99 = scmp.eq.s32.totalorder %s23, 0
      %p100 = por %p98, %p99
      %p101 = scmp.ne.s32.totalorder %s87, %s88
      %p102 = scmp.eq.s32.totalorder %s24, 7
      %p103 = por %p101, %p102
      %p105 = scmp.ne.s32.totalorder %s88, %s104
      %p106 = scmp.eq.s32.totalorder %s24, 0
      %p107 = por %p105, %p106
      %s108 = ssub.s32 %s27, %s43
      %p109 = scmp.eq.s32.totalorder %s108, 0
      %s111 = sadd.s32 %s110, 1
      %s112 = scalar_select %p109, %s110, %s111
      %p115 = pneg %p109
      %p116 = scmp.eq.s32.totalorder %s18, 7
      %p117 = por %p115, %p116
      %p118 = scmp.ne.s32.totalorder %s110, %s113
      %p119 = scmp.eq.s32.totalorder %s18, 0
      %p120 = por %p118, %p119
      %p121 = scmp.ne.s32.totalorder %s110, %s113
      %p122 = scmp.eq.s32.totalorder %s23, 7
      %p123 = por %p121, %p122
      %p124 = scmp.ne.s32.totalorder %s113, %s114
      %p125 = scmp.eq.s32.totalorder %s23, 0
      %p126 = por %p124, %p125
      %p127 = scmp.ne.s32.totalorder %s113, %s114
      %p128 = scmp.eq.s32.totalorder %s24, 7
      %p129 = por %p127, %p128
      %p131 = scmp.ne.s32.totalorder %s114, %s130
      %p132 = scmp.eq.s32.totalorder %s24, 0
      %p133 = por %p131, %p132
      %s134 = ssub.s32 %s27, %s43
      %p135 = scmp.eq.s32.totalorder %s134, 0
      %s137 = sadd.s32 %s136, 1
      %s138 = scalar_select %p135, %s136, %s137
      %p141 = pneg %p135
      %p142 = scmp.eq.s32.totalorder %s18, 7
      %p143 = por %p141, %p142
      %p144 = scmp.ne.s32.totalorder %s136, %s139
      %p145 = scmp.eq.s32.totalorder %s18, 0
      %p146 = por %p144, %p145
      %p147 = scmp.ne.s32.totalorder %s136, %s139
      %p148 = scmp.eq.s32.totalorder %s23, 7
      %p149 = por %p147, %p148
      %p150 = scmp.ne.s32.totalorder %s139, %s140
      %p151 = scmp.eq.s32.totalorder %s23, 0
      %p152 = por %p150, %p151
      %p153 = scmp.ne.s32.totalorder %s139, %s140
      %p154 = scmp.eq.s32.totalorder %s24, 7
      %p155 = por %p153, %p154
      %p157 = scmp.ne.s32.totalorder %s140, %s156
      %p158 = scmp.eq.s32.totalorder %s24, 0
      %p159 = por %p157, %p158
      %s160 = ssub.s32 %s27, %s43
      %p161 = scmp.eq.s32.totalorder %s160, 0
      %s163 = sadd.s32 %s162, 1
      %s164 = scalar_select %p161, %s162, %s163
      %p167 = pneg %p161
      %p168 = scmp.eq.s32.totalorder %s18, 7
      %p169 = por %p167, %p168
      %p170 = scmp.ne.s32.totalorder %s162, %s165
      %p171 = scmp.eq.s32.totalorder %s18, 0
      %p172 = por %p170, %p171
      %p173 = scmp.ne.s32.totalorder %s162, %s165
      %p174 = scmp.eq.s32.totalorder %s23, 7
      %p175 = por %p173, %p174
      %p176 = scmp.ne.s32.totalorder %s165, %s166
      %p177 = scmp.eq.s32.totalorder %s23, 0
      %p178 = por %p176, %p177
      %p179 = scmp.ne.s32.totalorder %s165, %s166
      %p180 = scmp.eq.s32.totalorder %s24, 7
      %p181 = por %p179, %p180
      %p183 = scmp.ne.s32.totalorder %s166, %s182
      %p184 = scmp.eq.s32.totalorder %s24, 0
      %p185 = por %p183, %p184
      %s186 = ssub.s32 %s27, %s43
      %p187 = scmp.eq.s32.totalorder %s186, 0
      %s189 = sadd.s32 %s188, 1
      %s190 = scalar_select %p187, %s188, %s189
      %p193 = pneg %p187
      %p194 = scmp.eq.s32.totalorder %s18, 7
      %p195 = por %p193, %p194
      %p196 = scmp.ne.s32.totalorder %s188, %s191
      %p197 = scmp.eq.s32.totalorder %s18, 0
      %p198 = por %p196, %p197
      %p199 = scmp.ne.s32.totalorder %s188, %s191
      %p200 = scmp.eq.s32.totalorder %s23, 7
      %p201 = por %p199, %p200
      %p202 = scmp.ne.s32.totalorder %s191, %s192
      %p203 = scmp.eq.s32.totalorder %s23, 0
      %p204 = por %p202, %p203
      %p205 = scmp.ne.s32.totalorder %s191, %s192
      %p206 = scmp.eq.s32.totalorder %s24, 7
      %p207 = por %p205, %p206
      %p209 = scmp.ne.s32.totalorder %s192, %s208
      %p210 = scmp.eq.s32.totalorder %s24, 0
      %p211 = por %p209, %p210
      %s212 = ssub.s32 %s27, %s43
      %p213 = scmp.eq.s32.totalorder %s212, 0
      %s215 = sadd.s32 %s214, 1
      %s216 = scalar_select %p213, %s214, %s215
      %p219 = pneg %p213
      %p220 = scmp.eq.s32.totalorder %s18, 7
      %p221 = por %p219, %p220
      %p222 = scmp.ne.s32.totalorder %s214, %s217
      %p223 = scmp.eq.s32.totalorder %s18, 0
      %p224 = por %p222, %p223
      %p225 = scmp.ne.s32.totalorder %s214, %s217
      %p226 = scmp.eq.s32.totalorder %s23, 7
      %p227 = por %p225, %p226
      %p228 = scmp.ne.s32.totalorder %s217, %s218
      %p229 = scmp.eq.s32.totalorder %s23, 0
      %p230 = por %p228, %p229
      %p231 = scmp.ne.s32.totalorder %s217, %s218
      %p232 = scmp.eq.s32.totalorder %s24, 7
      %p233 = por %p231, %p232
      %p235 = scmp.ne.s32.totalorder %s218, %s234
      %p236 = scmp.eq.s32.totalorder %s24, 0
      %p237 = por %p235, %p236
      %s238 = ssub.s32 %s27, %s43
      %p239 = scmp.eq.s32.totalorder %s238, 0
      %s241 = sadd.s32 %s240, 1
      %s242 = scalar_select %p239, %s240, %s241
      %p245 = pneg %p239
      %p246 = scmp.eq.s32.totalorder %s18, 7
      %p247 = por %p245, %p246
      %p248 = scmp.ne.s32.totalorder %s240, %s243
      %p249 = scmp.eq.s32.totalorder %s18, 0
      %p250 = por %p248, %p249
      %p251 = scmp.ne.s32.totalorder %s240, %s243
      %p252 = scmp.eq.s32.totalorder %s23, 7
      %p253 = por %p251, %p252
      %p254 = scmp.ne.s32.totalorder %s243, %s244
      %p255 = scmp.eq.s32.totalorder %s23, 0
      %p256 = por %p254, %p255
      %p257 = scmp.ne.s32.totalorder %s243, %s244
      %p258 = scmp.eq.s32.totalorder %s24, 7
      %p259 = por %p257, %p258
      %p261 = scmp.ne.s32.totalorder %s244, %s260
      %p262 = scmp.eq.s32.totalorder %s24, 0
      %p263 = por %p261, %p262
      %s265 = sadd.s32 %s264, 1
      %p268 = scmp.eq.s32.totalorder %s18, 7
      %p269 = scmp.ne.s32.totalorder %s264, %s266
      %p270 = scmp.eq.s32.totalorder %s18, 0
      %p271 = por %p269, %p270
      %p272 = scmp.ne.s32.totalorder %s264, %s266
      %p273 = scmp.eq.s32.totalorder %s23, 7
      %p274 = por %p272, %p273
      %p275 = scmp.ne.s32.totalorder %s266, %s267
      %p276 = scmp.eq.s32.totalorder %s23, 0
      %p277 = por %p275, %p276
      %p278 = scmp.ne.s32.totalorder %s266, %s267
      %p279 = scmp.eq.s32.totalorder %s24, 7
      %p280 = por %p278, %p279
      %p282 = scmp.ne.s32.totalorder %s267, %s281
      %p283 = scmp.eq.s32.totalorder %s24, 0
      %p284 = por %p282, %p283
      %s285 = ssub.s32 %s25, %s51
      %s286 = ssub.s32 %s26, %s47
      %s287 = sor.u32 %s285, %s286
      %p288 = scmp.eq.s32.totalorder %s287, 0
      %s290 = sadd.s32 %s289, 1
      %s291 = scalar_select %p288, %s289, %s290
      %p294 = pneg %p288
      %p295 = scmp.eq.s32.totalorder %s18, 7
      %p296 = por %p294, %p295
      %p297 = scmp.ne.s32.totalorder %s289, %s292
      %p298 = scmp.eq.s32.totalorder %s18, 0
      %p299 = por %p297, %p298
      %p300 = scmp.ne.s32.totalorder %s289, %s292
      %p301 = scmp.eq.s32.totalorder %s23, 7
      %p302 = por %p300, %p301
      %p303 = scmp.ne.s32.totalorder %s292, %s293
      %p304 = scmp.eq.s32.totalorder %s23, 0
      %p305 = por %p303, %p304
      %p306 = scmp.ne.s32.totalorder %s292, %s293
      %p307 = scmp.eq.s32.totalorder %s24, 7
      %p308 = por %p306, %p307
      %p310 = scmp.ne.s32.totalorder %s293, %s309
      %p311 = scmp.eq.s32.totalorder %s24, 0
      %p312 = por %p310, %p311
      %p313 = scmp.le.s32.totalorder 1, %s18
      %p314 = scmp.lt.s32.totalorder %s18, 9
      %p315 = pnand %p313, %p314
      %p316 = pneg %p315
      // Predicated region
      $region9: #{attention_forward.1} parent=5 // pred_check
        _
      $region10: #{attention_forward.1} parent=5 // pred_check_branch
        %318 = sbr.rel (%p315) target = $region12
      $region11: #{attention_forward.1} parent=5 // pred_region
        %s319 = ssub.s32 %s18, 1
        // Predicated region
        $region13: #{attention_forward.1} parent=11 // pred_check
          %p320 = pneg %p277
        $region14: #{attention_forward.1} parent=11 // pred_check_branch
          %322 = sbr.rel (%p320) target = $region16
        $region15: #{attention_forward.1} parent=11 // pred_region
          _
        $region16: #{attention_forward.1} parent=11 // pred_fallthru
          _
      $region12: #{attention_forward.1} parent=5 // pred_fallthru
        _
      %p323 = scmp.lt.s32.totalorder %s18, 8
      // Predicated region
      $region17: #{attention_forward.1} parent=5 // pred_check
        %p324 = pneg %p323
      $region18: #{attention_forward.1} parent=5 // pred_check_branch
        %326 = sbr.rel (%p324) target = $region20
      $region19: #{attention_forward.1} parent=5 // pred_region
        // Predicated region
        $region21: #{attention_forward.1} parent=19 // pred_check
          %p327 = pneg %p66
        $region22: #{attention_forward.1} parent=19 // pred_check_branch
          %329 = sbr.rel (%p327) target = $region24
        $region23: #{attention_forward.1} parent=19 // pred_region
          %s330 = smul.u32 2, %s26
          %p331 = scmp.lt.s32.totalorder %s25, 1
          %s332 = scalar_select %p331, %s25, 1
          %p333 = scmp.lt.s32.totalorder %s330, 1
          %s334 = scalar_select %p333, %s330, 1
          %s335 = smul.addr %s332, 2
          %s336 = sadd.s32 %s334, %s335
          %s337 = smul.addr %s336, 8
          %s338 = scalar_lea.vmem %s0, %s337
          %s339 = smul.u32 2, %s26
        $region24: #{attention_forward.1} parent=19 // pred_fallthru
          _
        // Predicated region
        $region25: #{attention_forward.1} parent=19 // pred_check
          %p340 = pneg %p94
        $region26: #{attention_forward.1} parent=19 // pred_check_branch
          %342 = sbr.rel (%p340) target = $region28
        $region27: #{attention_forward.1} parent=19 // pred_region
          %s343 = smul.u32 2, %s28
          %p344 = scmp.lt.s32.totalorder %s25, 1
          %s345 = scalar_select %p344, %s25, 1
          %p346 = scmp.lt.s32.totalorder %s343, 1
          %s347 = scalar_select %p346, %s343, 1
          %s348 = smul.addr %s345, 2
          %s349 = sadd.s32 %s347, %s348
          %s350 = smul.addr %s349, 8
          %s351 = scalar_lea.vmem %s1, %s350
          %s352 = smul.u32 2, %s28
        $region28: #{attention_forward.1} parent=19 // pred_fallthru
          _
        // Predicated region
        $region29: #{attention_forward.1} parent=19 // pred_check
          %p353 = pneg %p120
        $region30: #{attention_forward.1} parent=19 // pred_check_branch
          %355 = sbr.rel (%p353) target = $region32
        $region31: #{attention_forward.1} parent=19 // pred_region
          %p356 = scmp.lt.s32.totalorder %s27, 3
          %s357 = scalar_select %p356, %s27, 3
          %s358 = smul.addr %s357, 4
          %s359 = scalar_lea.vmem %s2, %s358
        $region32: #{attention_forward.1} parent=19 // pred_fallthru
          _
        // Predicated region
        $region33: #{attention_forward.1} parent=19 // pred_check
          %p360 = pneg %p146
        $region34: #{attention_forward.1} parent=19 // pred_check_branch
          %362 = sbr.rel (%p360) target = $region36
        $region35: #{attention_forward.1} parent=19 // pred_region
          %p363 = scmp.lt.s32.totalorder %s27, 3
          %s364 = scalar_select %p363, %s27, 3
          %s365 = smul.addr %s364, 4
          %s366 = scalar_lea.vmem %s3, %s365
        $region36: #{attention_forward.1} parent=19 // pred_fallthru
          _
        // Predicated region
        $region37: #{attention_forward.1} parent=19 // pred_check
          %p367 = pneg %p172
        $region38: #{attention_forward.1} parent=19 // pred_check_branch
          %369 = sbr.rel (%p367) target = $region40
        $region39: #{attention_forward.1} parent=19 // pred_region
          %p370 = scmp.lt.s32.totalorder %s27, 3
          %s371 = scalar_select %p370, %s27, 3
          %s372 = smul.addr %s371, 4
          %s373 = scalar_lea.vmem %s4, %s372
        $region40: #{attention_forward.1} parent=19 // pred_fallthru
          _
        // Predicated region
        $region41: #{attention_forward.1} parent=19 // pred_check
          %p374 = pneg %p198
        $region42: #{attention_forward.1} parent=19 // pred_check_branch
          %376 = sbr.rel (%p374) target = $region44
        $region43: #{attention_forward.1} parent=19 // pred_region
          %p377 = scmp.lt.s32.totalorder %s27, 3
          %s378 = scalar_select %p377, %s27, 3
          %s379 = smul.addr %s378, 4
          %s380 = smul.addr %s379, 4
          %s381 = scalar_lea.vmem %s5, %s380
        $region44: #{attention_forward.1} parent=19 // pred_fallthru
          _
        // Predicated region
        $region45: #{attention_forward.1} parent=19 // pred_check
          %p382 = pneg %p224
        $region46: #{attention_forward.1} parent=19 // pred_check_branch
          %384 = sbr.rel (%p382) target = $region48
        $region47: #{attention_forward.1} parent=19 // pred_region
          %p385 = scmp.lt.s32.totalorder %s27, 3
          %s386 = scalar_select %p385, %s27, 3
          %s387 = smul.addr %s386, 2
          %s388 = scalar_lea.vmem %s6, %s387
        $region48: #{attention_forward.1} parent=19 // pred_fallthru
          _
        // Predicated region
        $region49: #{attention_forward.1} parent=19 // pred_check
          %p389 = pneg %p250
        $region50: #{attention_forward.1} parent=19 // pred_check_branch
          %391 = sbr.rel (%p389) target = $region52
        $region51: #{attention_forward.1} parent=19 // pred_region
          %p392 = scmp.lt.s32.totalorder %s27, 3
          %s393 = scalar_select %p392, %s27, 3
          %s394 = smul.addr %s393, 4
          %s395 = smul.addr %s394, 4
          %s396 = scalar_lea.vmem %s7, %s395
        $region52: #{attention_forward.1} parent=19 // pred_fallthru
          _
      $region20: #{attention_forward.1} parent=5 // pred_fallthru
        _
      %p397 = scmp.le.s32.totalorder 1, %s18
      %p398 = scmp.lt.s32.totalorder %s18, 9
      %p399 = pnand %p397, %p398
      %p400 = pneg %p399
      // Predicated region
      $region53: #{attention_forward.1} parent=5 // pred_check
        _
      $region54: #{attention_forward.1} parent=5 // pred_check_branch
        %402 = sbr.rel (%p399) target = $region56
      $region55: #{attention_forward.1} parent=5 // pred_region
        %s403 = ssub.s32 %s18, 1
        %s404 = smul.u32 2, %s30
        %p405 = scmp.lt.s32.totalorder %s29, 1
        %s406 = scalar_select %p405, %s29, 1
        %p407 = scmp.lt.s32.totalorder %s404, 1
        %s408 = scalar_select %p407, %s404, 1
        %s409 = smul.addr %s406, 2
        %s410 = sadd.s32 %s408, %s409
        %s411 = smul.addr %s410, 8
        %s412 = scalar_lea.vmem %s0, %s411
        %p413 = pneg %p72
        %p414 = pneg %p69
        %s415 = smul.u32 2, %s32
        %p416 = scmp.lt.s32.totalorder %s29, 1
        %s417 = scalar_select %p416, %s29, 1
        %p418 = scmp.lt.s32.totalorder %s415, 1
        %s419 = scalar_select %p418, %s415, 1
        %s420 = smul.addr %s417, 2
        %s421 = sadd.s32 %s419, %s420
        %s422 = smul.addr %s421, 8
        %s423 = scalar_lea.vmem %s1, %s422
        %p424 = pneg %p100
        %p425 = pneg %p97
        %p426 = scmp.lt.s32.totalorder %s31, 3
        %s427 = scalar_select %p426, %s31, 3
        %s428 = smul.addr %s427, 4
        %s429 = scalar_lea.vmem %s2, %s428
        %p430 = pneg %p126
        %p431 = pneg %p123
        %p432 = scmp.lt.s32.totalorder %s31, 3
        %s433 = scalar_select %p432, %s31, 3
        %s434 = smul.addr %s433, 4
        %s435 = scalar_lea.vmem %s3, %s434
        %p436 = pneg %p152
        %p437 = pneg %p149
        %p438 = scmp.lt.s32.totalorder %s31, 3
        %s439 = scalar_select %p438, %s31, 3
        %s440 = smul.addr %s439, 4
        %s441 = scalar_lea.vmem %s4, %s440
        %p442 = pneg %p178
        %p443 = pneg %p175
        %p444 = scmp.lt.s32.totalorder %s31, 3
        %s445 = scalar_select %p444, %s31, 3
        %s446 = smul.addr %s445, 4
        %s447 = smul.addr %s446, 4
        %s448 = scalar_lea.vmem %s5, %s447
        %p449 = pneg %p204
        %p450 = pneg %p201
        %p451 = scmp.lt.s32.totalorder %s31, 3
        %s452 = scalar_select %p451, %s31, 3
        %s453 = smul.addr %s452, 2
        %s454 = scalar_lea.vmem %s6, %s453
        %p455 = pneg %p230
        %p456 = pneg %p227
        %p457 = scmp.lt.s32.totalorder %s31, 3
        %s458 = scalar_select %p457, %s31, 3
        %s459 = smul.addr %s458, 4
        %s460 = smul.addr %s459, 4
        %s461 = scalar_lea.vmem %s7, %s460
        %p462 = pneg %p256
        %p463 = pneg %p253
        %p464 = pneg %p277
        %p465 = pneg %p274
        %p466 = pneg %p305
        %p467 = pneg %p302
        %s468 = sand.u32 %s292, 1
        %s469 = scalar_lea.sflag [#allocation9], %s468
        %s470 = sand.u32 %s292, 1
        %s471 = smul.addr %s470, 16
        %s472 = scalar_lea.vmem [#allocation8], %s471
        %s473 = smul.u32 2, %s30
        %p474 = scmp.lt.s32.totalorder %s29, 1
        %s475 = scalar_select %p474, %s29, 1
        %p476 = scmp.lt.s32.totalorder %s473, 1
        %s477 = scalar_select %p476, %s473, 1
        %s478 = smul.addr %s475, 2
        %s479 = sadd.s32 %s477, %s478
        %s480 = smul.addr %s479, 8
        %s481 = scalar_lea.vmem %s0, %s480
        %s482 = smul.u32 2, %s30
        %s483 = smul.u32 2, %s32
        %p484 = scmp.lt.s32.totalorder %s29, 1
        %s485 = scalar_select %p484, %s29, 1
        %p486 = scmp.lt.s32.totalorder %s483, 1
        %s487 = scalar_select %p486, %s483, 1
        %s488 = smul.addr %s485, 2
        %s489 = sadd.s32 %s487, %s488
        %s490 = smul.addr %s489, 8
        %s491 = scalar_lea.vmem %s1, %s490
        %s492 = smul.u32 2, %s32
        %p493 = scmp.lt.s32.totalorder %s31, 3
        %s494 = scalar_select %p493, %s31, 3
        %s495 = smul.addr %s494, 4
        %s496 = scalar_lea.vmem %s2, %s495
        %p497 = scmp.lt.s32.totalorder %s31, 3
        %s498 = scalar_select %p497, %s31, 3
        %s499 = smul.addr %s498, 4
        %s500 = scalar_lea.vmem %s3, %s499
        %p501 = scmp.lt.s32.totalorder %s31, 3
        %s502 = scalar_select %p501, %s31, 3
        %s503 = smul.addr %s502, 4
        %s504 = scalar_lea.vmem %s4, %s503
        %p505 = scmp.lt.s32.totalorder %s31, 3
        %s506 = scalar_select %p505, %s31, 3
        %s507 = smul.addr %s506, 4
        %s508 = smul.addr %s507, 4
        %s509 = scalar_lea.vmem %s5, %s508
        %p510 = scmp.lt.s32.totalorder %s31, 3
        %s511 = scalar_select %p510, %s31, 3
        %s512 = smul.addr %s511, 2
        %s513 = scalar_lea.vmem %s6, %s512
        %p514 = scmp.lt.s32.totalorder %s31, 3
        %s515 = scalar_select %p514, %s31, 3
        %s516 = smul.addr %s515, 4
        %s517 = smul.addr %s516, 4
        %s518 = scalar_lea.vmem %s7, %s517
        %s519 = smul.u32 2, %s30
        %p521 = scmp.eq.s32.totalorder %s31, 0
        %p522 = scmp.eq.s32.totalorder %s32, 0
        %p523 = pnand %p521, %p522
        %p524 = pneg %p523
        // Predicated region
        $region57: #{attention_forward.1} parent=55 // pred_check
          _
        $region58: #{attention_forward.1} parent=55 // pred_check_branch
          %526 = sbr.rel (%p523) target = $region60
        $region59: #{attention_forward.1} parent=55 // pred_region
          %v527 = vld [vmem:[%s481] sm:$0xff]
          %v528 = vld [vmem:[%s481 + $0x8] sm:$0xff]
          %v529 = vmul.f32 %v527, %v527
          %v530 = vmul.f32 %v528, %v528
          %vm531 = vcmask 64512
          %v532 = vsel %vm531, %v529, 0.0
          %533 = vadd.xlane.f32.xlu0 %v532
          %v534 = vpop.xlane.xlu0 %533
          %v535 = vsel %vm531, %v530, 0.0
          %536 = vadd.xlane.f32.xlu0 %v535
          %v537 = vpop.xlane.xlu0 %536
          %v538 = vadd.f32 %v534, 1e-24
          %v539 = vadd.f32 %v537, 1e-24
          %v540 = vrsqrt.pop %v538
          %v541 = vrsqrt.pop %v539
          %v542 = vmul.f32 %v527, %v540
          %v543 = vmul.f32 %v528, %v541
          %544 = vst.msk [vmem:[#allocation2] sm:$0xff] %vm531, %v542
          %545 = vst.msk [vmem:[#allocation2 + $0x8] sm:$0xff] %vm531, %v543
        $region60: #{attention_forward.1} parent=55 // pred_fallthru
          _
        // Predicated region
        $region61: #{attention_forward.1} parent=55 // pred_check
          %p546 = pneg %p522
        $region62: #{attention_forward.1} parent=55 // pred_check_branch
          %548 = sbr.rel (%p546) target = $region64
        $region63: #{attention_forward.1} parent=55 // pred_region
          %v549 = vld [vmem:[#allocation2] sm:$0xff]
          %v550 = vld [vmem:[#allocation2 + $0x8] sm:$0xff]
          %v551 = vpack.c.bf16 %v550, %v549
          %v552 = vld [vmem:[%s496] sm:$0xf]
          %vm553 = vcmask 64512
          %v555 = vsel %vm553, %v551, 0
          %vm557 = vcmask 1043456
          %v559 = vsel %vm557, %v552, 0
          %561 = vmatprep.subr.bf16.mxu0 0
          %562 = vmatpush1.bf16.msra.mxu0 %v559
          %563 = vmatprep.subr.bf16.mxu0 0
          %564 = vmatpush1.bf16.msra.mxu0 0
          %565 = vmatprep.subr.bf16.mxu0 0
          %566 = vmatpush1.bf16.msra.mxu0 0
          %567 = vmatprep.subr.bf16.mxu0 0
          %568 = vmatpush1.bf16.msra.mxu0 0
          %569 = vmatprep.subr.bf16.mxu0 0
          %570 = vmatpush1.bf16.msra.mxu0 0
          %571 = vmatprep.subr.bf16.mxu0 0
          %572 = vmatpush1.bf16.msra.mxu0 0
          %573 = vmatprep.subr.bf16.mxu0 0
          %574 = vmatpush1.bf16.msra.mxu0 0
          %575 = vmatprep.subr.bf16.mxu0 0
          %576 = vmatpush1.bf16.msra.mxu0 0
          %577 = vmatprep.subr.bf16.mxu0 0
          %578 = vmatpush1.bf16.msra.mxu0 0
          %579 = vmatprep.subr.bf16.mxu0 0
          %580 = vmatpush1.bf16.msra.mxu0 0
          %581 = vmatprep.subr.bf16.mxu0 0
          %582 = vmatpush1.bf16.msra.mxu0 0
          %583 = vmatprep.subr.bf16.mxu0 0
          %584 = vmatpush1.bf16.msra.mxu0 0
          %585 = vmatprep.subr.bf16.mxu0 0
          %586 = vmatpush1.bf16.msra.mxu0 0
          %587 = vmatprep.subr.bf16.mxu0 0
          %588 = vmatpush1.bf16.msra.mxu0 0
          %589 = vmatprep.subr.bf16.mxu0 0
          %590 = vmatpush1.bf16.msra.mxu0 0
          %591 = vmatprep.subr.bf16.mxu0 0
          %592 = vmatpush1.bf16.msra.mxu0 0
          %593 = vmatprep.mubr.bf16.mxu0 0
          %594 = vmatmul.mubr.bf16.gmra.mrb[0].mxu0 %v555
          %v595 = vpop.f32.mrb[0].mxu0
          %v596 = vadd.f32 0.0, %v595
          %v597 = vpop.f32.mrb[0].mxu0
          %v598 = vpop.f32.mrb[0].mxu0
          %v599 = vadd.f32 0.0, %v598
          %v600 = vpop.f32.mrb[0].mxu0
          %601 = vdwg.mxu0
          %v602 = vpack.c.bf16 %v599, %v596
          %vm603 = vcmask 261120
          %604 = vst.msk [vmem:[#allocation3] sm:$0xff] %vm603, %v602
          %v605 = vld [vmem:[%s509] sm:$0xf]
          %v606 = vld [vmem:[%s509 + $0x4] sm:$0xf]
          %v607 = vld [vmem:[%s509 + $0x8] sm:$0xf]
          %v608 = vld [vmem:[%s509 + $0xc] sm:$0xf]
          %v613 = vunpack.c.l.b16 %v605
          %v614 = vunpack.c.l.b16 %v606
          %v615 = vunpack.c.l.b16 %v607
          %v616 = vunpack.c.l.b16 %v608
          %v617 = vpack.c.b16 %v614, %v613
          %v618 = vpack.c.b16 %v616, %v615
          %v622 = vsel %vm603, %v602, 0
          %624 = vmatprep.subr.bf16.mxu0 0
          %625 = vmatpush1.bf16.msra.mxu0 %v617
          %626 = vmatprep.subr.bf16.mxu0 0
          %627 = vmatpush1.bf16.msra.mxu0 %v618
          %628 = vmatprep.subr.bf16.mxu0 0
          %629 = vmatpush1.bf16.msra.mxu0 0
          %630 = vmatprep.subr.bf16.mxu0 0
          %631 = vmatpush1.bf16.msra.mxu0 0
          %632 = vmatprep.subr.bf16.mxu0 0
          %633 = vmatpush1.bf16.msra.mxu0 0
          %634 = vmatprep.subr.bf16.mxu0 0
          %635 = vmatpush1.bf16.msra.mxu0 0
          %636 = vmatprep.subr.bf16.mxu0 0
          %637 = vmatpush1.bf16.msra.mxu0 0
          %638 = vmatprep.subr.bf16.mxu0 0
          %639 = vmatpush1.bf16.msra.mxu0 0
          %640 = vmatprep.subr.bf16.mxu0 0
          %641 = vmatpush1.bf16.msra.mxu0 0
          %642 = vmatprep.subr.bf16.mxu0 0
          %643 = vmatpush1.bf16.msra.mxu0 0
          %644 = vmatprep.subr.bf16.mxu0 0
          %645 = vmatpush1.bf16.msra.mxu0 0
          %646 = vmatprep.subr.bf16.mxu0 0
          %647 = vmatpush1.bf16.msra.mxu0 0
          %648 = vmatprep.subr.bf16.mxu0 0
          %649 = vmatpush1.bf16.msra.mxu0 0
          %650 = vmatprep.subr.bf16.mxu0 0
          %651 = vmatpush1.bf16.msra.mxu0 0
          %652 = vmatprep.subr.bf16.mxu0 0
          %653 = vmatpush1.bf16.msra.mxu0 0
          %654 = vmatprep.subr.bf16.mxu0 0
          %655 = vmatpush1.bf16.msra.mxu0 0
          %656 = vmatprep.mubr.bf16.mxu0 0
          %657 = vmatmul.mubr.bf16.gmra.mrb[0].mxu0 %v622
          %v658 = vpop.f32.mrb[0].mxu0
          %v659 = vadd.f32 0.0, %v658
          %v660 = vpop.f32.mrb[0].mxu0
          %v661 = vpop.f32.mrb[0].mxu0
          %v662 = vadd.f32 0.0, %v661
          %v663 = vpop.f32.mrb[0].mxu0
          %664 = vdwg.mxu0
          %vm665 = vcmask 31744
          %v666 = vsel %vm665, %v659, -inf
          %667 = vmax.xlane.f32.xlu0 %v666
          %v668 = vpop.xlane.xlu0 %667
          %v669 = vsel %vm665, %v662, -inf
          %670 = vmax.xlane.f32.xlu0 %v669
          %v671 = vpop.xlane.xlu0 %670
          %v672 = vsub.f32 %v659, %v668
          %v673 = vsub.f32 %v662, %v671
          %v674 = vmul.f32 %v672, 1.442695
          %v675 = vpow.pop %v674
          %v676 = vmul.f32 %v673, 1.442695
          %v677 = vpow.pop %v676
          %vm678 = vcmask 7168
          %679 = vst.msk [vmem:[#allocation4] sm:$0xff] %vm678, %v668
          %680 = vst.msk [vmem:[#allocation4 + $0x8] sm:$0xff] %vm678, %v671
          %v681 = vsel %vm665, %v675, 0.0
          %682 = vadd.xlane.f32.xlu0 %v681
          %v683 = vpop.xlane.xlu0 %682
          %v684 = vsel %vm665, %v677, 0.0
          %685 = vadd.xlane.f32.xlu0 %v684
          %v686 = vpop.xlane.xlu0 %685
          %687 = vst.msk [vmem:[#allocation5] sm:$0xff] %vm678, %v683
          %688 = vst.msk [vmem:[#allocation5 + $0x8] sm:$0xff] %vm678, %v686
          %v689 = vpack.c.bf16 %v677, %v675
          %v690 = vld [vmem:[%s513] sm:$0x3]
          %v692 = vsel %vm665, %v689, 0
          %vm694 = vcmask 1041408
          %v696 = vsel %vm694, %v690, 0
          %698 = vmatprep.subr.bf16.mxu0 0
          %699 = vmatpush1.bf16.msra.mxu0 %v696
          %700 = vmatprep.subr.bf16.mxu0 0
          %701 = vmatpush1.bf16.msra.mxu0 0
          %702 = vmatprep.subr.bf16.mxu0 0
          %703 = vmatpush1.bf16.msra.mxu0 0
          %704 = vmatprep.subr.bf16.mxu0 0
          %705 = vmatpush1.bf16.msra.mxu0 0
          %706 = vmatprep.subr.bf16.mxu0 0
          %707 = vmatpush1.bf16.msra.mxu0 0
          %708 = vmatprep.subr.bf16.mxu0 0
          %709 = vmatpush1.bf16.msra.mxu0 0
          %710 = vmatprep.subr.bf16.mxu0 0
          %711 = vmatpush1.bf16.msra.mxu0 0
          %712 = vmatprep.subr.bf16.mxu0 0
          %713 = vmatpush1.bf16.msra.mxu0 0
          %714 = vmatprep.subr.bf16.mxu0 0
          %715 = vmatpush1.bf16.msra.mxu0 0
          %716 = vmatprep.subr.bf16.mxu0 0
          %717 = vmatpush1.bf16.msra.mxu0 0
          %718 = vmatprep.subr.bf16.mxu0 0
          %719 = vmatpush1.bf16.msra.mxu0 0
          %720 = vmatprep.subr.bf16.mxu0 0
          %721 = vmatpush1.bf16.msra.mxu0 0
          %722 = vmatprep.subr.bf16.mxu0 0
          %723 = vmatpush1.bf16.msra.mxu0 0
          %724 = vmatprep.subr.bf16.mxu0 0
          %725 = vmatpush1.bf16.msra.mxu0 0
          %726 = vmatprep.subr.bf16.mxu0 0
          %727 = vmatpush1.bf16.msra.mxu0 0
          %728 = vmatprep.subr.bf16.mxu0 0
          %729 = vmatpush1.bf16.msra.mxu0 0
          %730 = vmatprep.mubr.bf16.mxu0 0
          %731 = vmatmul.mubr.bf16.gmra.mrb[0].mxu0 %v692
          %v732 = vpop.f32.mrb[0].mxu0
          %v733 = vadd.f32 0.0, %v732
          %v734 = vpop.f32.mrb[0].mxu0
          %v735 = vpop.f32.mrb[0].mxu0
          %v736 = vadd.f32 0.0, %v735
          %v737 = vpop.f32.mrb[0].mxu0
          %738 = vdwg.mxu0
          %739 = vst.msk [vmem:[#allocation6] sm:$0xff] %vm603, %v733
          %740 = vst.msk [vmem:[#allocation6 + $0x8] sm:$0xff] %vm603, %v736
        $region64: #{attention_forward.1} parent=55 // pred_fallthru
          _
        %v741 = vld [vmem:[%s491] sm:$0xff]
        %v742 = vld [vmem:[%s491 + $0x8] sm:$0xff]
        %v743 = vmul.f32 %v741, %v741
        %v744 = vmul.f32 %v742, %v742
        %vm745 = vcmask 64512
        %v746 = vsel %vm745, %v743, 0.0
        %747 = vadd.xlane.f32.xlu0 %v746
        %v748 = vpop.xlane.xlu0 %747
        %v749 = vsel %vm745, %v744, 0.0
        %750 = vadd.xlane.f32.xlu0 %v749
        %v751 = vpop.xlane.xlu0 %750
        %v752 = vadd.f32 %v748, 1e-24
        %v753 = vadd.f32 %v751, 1e-24
        %v754 = vrsqrt.pop %v752
        %v755 = vrsqrt.pop %v753
        %v756 = vmul.f32 %v741, %v754
        %v757 = vmul.f32 %v742, %v755
        %v758 = vpack.c.bf16 %v757, %v756
        %v759 = vld [vmem:[%s500] sm:$0xf]
        %v761 = vsel %vm745, %v758, 0
        %vm763 = vcmask 1043456
        %v765 = vsel %vm763, %v759, 0
        %767 = vmatprep.subr.bf16.mxu0 0
        %768 = vmatpush1.bf16.msra.mxu0 %v765
        %769 = vmatprep.subr.bf16.mxu0 0
        %770 = vmatpush1.bf16.msra.mxu0 0
        %771 = vmatprep.subr.bf16.mxu0 0
        %772 = vmatpush1.bf16.msra.mxu0 0
        %773 = vmatprep.subr.bf16.mxu0 0
        %774 = vmatpush1.bf16.msra.mxu0 0
        %775 = vmatprep.subr.bf16.mxu0 0
        %776 = vmatpush1.bf16.msra.mxu0 0
        %777 = vmatprep.subr.bf16.mxu0 0
        %778 = vmatpush1.bf16.msra.mxu0 0
        %779 = vmatprep.subr.bf16.mxu0 0
        %780 = vmatpush1.bf16.msra.mxu0 0
        %781 = vmatprep.subr.bf16.mxu0 0
        %782 = vmatpush1.bf16.msra.mxu0 0
        %783 = vmatprep.subr.bf16.mxu0 0
        %784 = vmatpush1.bf16.msra.mxu0 0
        %785 = vmatprep.subr.bf16.mxu0 0
        %786 = vmatpush1.bf16.msra.mxu0 0
        %787 = vmatprep.subr.bf16.mxu0 0
        %788 = vmatpush1.bf16.msra.mxu0 0
        %789 = vmatprep.subr.bf16.mxu0 0
        %790 = vmatpush1.bf16.msra.mxu0 0
        %791 = vmatprep.subr.bf16.mxu0 0
        %792 = vmatpush1.bf16.msra.mxu0 0
        %793 = vmatprep.subr.bf16.mxu0 0
        %794 = vmatpush1.bf16.msra.mxu0 0
        %795 = vmatprep.subr.bf16.mxu0 0
        %796 = vmatpush1.bf16.msra.mxu0 0
        %797 = vmatprep.subr.bf16.mxu0 0
        %798 = vmatpush1.bf16.msra.mxu0 0
        %799 = vmatprep.mubr.bf16.mxu0 0
        %800 = vmatmul.mubr.bf16.gmra.mrb[0].mxu0 %v761
        %v801 = vpop.f32.mrb[0].mxu0
        %v802 = vadd.f32 0.0, %v801
        %v803 = vpop.f32.mrb[0].mxu0
        %v804 = vpop.f32.mrb[0].mxu0
        %v805 = vadd.f32 0.0, %v804
        %v806 = vpop.f32.mrb[0].mxu0
        %807 = vdwg.mxu0
        %v808 = vpack.c.bf16 %v805, %v802
        %v809 = vld [vmem:[%s504] sm:$0xf]
        %v811 = vsel %vm763, %v809, 0
        %813 = vmatprep.subr.bf16.mxu0 0
        %814 = vmatpush1.bf16.msra.mxu0 %v811
        %815 = vmatprep.subr.bf16.mxu0 0
        %816 = vmatpush1.bf16.msra.mxu0 0
        %817 = vmatprep.subr.bf16.mxu0 0
        %818 = vmatpush1.bf16.msra.mxu0 0
        %819 = vmatprep.subr.bf16.mxu0 0
        %820 = vmatpush1.bf16.msra.mxu0 0
        %821 = vmatprep.subr.bf16.mxu0 0
        %822 = vmatpush1.bf16.msra.mxu0 0
        %823 = vmatprep.subr.bf16.mxu0 0
        %824 = vmatpush1.bf16.msra.mxu0 0
        %825 = vmatprep.subr.bf16.mxu0 0
        %826 = vmatpush1.bf16.msra.mxu0 0
        %827 = vmatprep.subr.bf16.mxu0 0
        %828 = vmatpush1.bf16.msra.mxu0 0
        %829 = vmatprep.subr.bf16.mxu0 0
        %830 = vmatpush1.bf16.msra.mxu0 0
        %831 = vmatprep.subr.bf16.mxu0 0
        %832 = vmatpush1.bf16.msra.mxu0 0
        %833 = vmatprep.subr.bf16.mxu0 0
        %834 = vmatpush1.bf16.msra.mxu0 0
        %835 = vmatprep.subr.bf16.mxu0 0
        %836 = vmatpush1.bf16.msra.mxu0 0
        %837 = vmatprep.subr.bf16.mxu0 0
        %838 = vmatpush1.bf16.msra.mxu0 0
        %839 = vmatprep.subr.bf16.mxu0 0
        %840 = vmatpush1.bf16.msra.mxu0 0
        %841 = vmatprep.subr.bf16.mxu0 0
        %842 = vmatpush1.bf16.msra.mxu0 0
        %843 = vmatprep.subr.bf16.mxu0 0
        %844 = vmatpush1.bf16.msra.mxu0 0
        %845 = vmatprep.mubr.bf16.mxu0 0
        %846 = vmatmul.mubr.bf16.gmra.mrb[0].mxu0 %v761
        %v847 = vpop.f32.mrb[0].mxu0
        %v848 = vadd.f32 0.0, %v847
        %v849 = vpop.f32.mrb[0].mxu0
        %v850 = vpop.f32.mrb[0].mxu0
        %v851 = vadd.f32 0.0, %v850
        %v852 = vpop.f32.mrb[0].mxu0
        %853 = vdwg.mxu0
        %v854 = vpack.c.bf16 %v851, %v848
        %v855 = vld [vmem:[#allocation3] sm:$0xff]
        %vm856 = vcmask 261120
        %v858 = vsel %vm856, %v855, 0
        %v861 = vsel %vm856, %v808, 0
        %863 = vmatprep.subr.bf16.mxu0 0
        %864 = vmatpush1.bf16.xpose.msra.mxu0 %v861
        %865 = vmatprep.subr.bf16.mxu0 0
        %866 = vmatpush1.bf16.xpose.msra.mxu0 0
        %867 = vmatprep.subr.bf16.mxu0 0
        %868 = vmatpush1.bf16.xpose.msra.mxu0 0
        %869 = vmatprep.subr.bf16.mxu0 0
        %870 = vmatpush1.bf16.xpose.msra.mxu0 0
        %871 = vmatprep.subr.bf16.mxu0 0
        %872 = vmatpush1.bf16.xpose.msra.mxu0 0
        %873 = vmatprep.subr.bf16.mxu0 0
        %874 = vmatpush1.bf16.xpose.msra.mxu0 0
        %875 = vmatprep.subr.bf16.mxu0 0
        %876 = vmatpush1.bf16.xpose.msra.mxu0 0
        %877 = vmatprep.subr.bf16.mxu0 0
        %878 = vmatpush1.bf16.xpose.msra.mxu0 0
        %879 = vmatprep.subr.bf16.mxu0 0
        %880 = vmatpush1.bf16.xpose.msra.mxu0 0
        %881 = vmatprep.subr.bf16.mxu0 0
        %882 = vmatpush1.bf16.xpose.msra.mxu0 0
        %883 = vmatprep.subr.bf16.mxu0 0
        %884 = vmatpush1.bf16.xpose.msra.mxu0 0
        %885 = vmatprep.subr.bf16.mxu0 0
        %886 = vmatpush1.bf16.xpose.msra.mxu0 0
        %887 = vmatprep.subr.bf16.mxu0 0
        %888 = vmatpush1.bf16.xpose.msra.mxu0 0
        %889 = vmatprep.subr.bf16.mxu0 0
        %890 = vmatpush1.bf16.xpose.msra.mxu0 0
        %891 = vmatprep.subr.bf16.mxu0 0
        %892 = vmatpush1.bf16.xpose.msra.mxu0 0
        %893 = vmatprep.subr.bf16.mxu0 0
        %894 = vmatpush1.bf16.xpose.msra.mxu0 0
        %895 = vmatprep.mubr.bf16.mxu0 0
        %896 = vmatmul.mubr.bf16.gmra.mrb[0].mxu0 %v858
        %v897 = vpop.f32.mrb[0].mxu0
        %v898 = vadd.f32 0.0, %v897
        %v899 = vpop.f32.mrb[0].mxu0
        %v900 = vpop.f32.mrb[0].mxu0
        %v901 = vadd.f32 0.0, %v900
        %v902 = vpop.f32.mrb[0].mxu0
        %903 = vdwg.mxu0
        %v904 = vld [vmem:[#allocation4] sm:$0xff]
        %v905 = vld [vmem:[#allocation4 + $0x8] sm:$0xff]
        %vm906 = vcmask 130048
        %v907 = vsel %vm906, %v898, -inf
        %908 = vmax.xlane.f32.xlu0 %v907
        %v909 = vpop.xlane.xlu0 %908
        %v910 = vsel %vm906, %v901, -inf
        %911 = vmax.xlane.f32.xlu0 %v910
        %v912 = vpop.xlane.xlu0 %911
        %v913 = vmax.f32 %v904, %v909
        %v914 = vmax.f32 %v905, %v912
        %v915 = vsub.f32 %v904, %v913
        %v916 = vsub.f32 %v905, %v914
        %v917 = vmul.f32 %v915, 1.442695
        %v918 = vpow.pop %v917
        %v919 = vmul.f32 %v916, 1.442695
        %v920 = vpow.pop %v919
        %922 = vset.pattern.permute.xlu0 0
        %923 = vperm.xlu0 %922, %v913
        %v924 = vpop.permute.xlu0 %923
        %927 = vset.pattern.permute.xlu0 0
        %928 = vperm.xlu0 %927, %v914
        %v929 = vpop.permute.xlu0 %928
        %v931 = vsub.f32 %v898, %v924
        %v932 = vsub.f32 %v901, %v929
        %v933 = vmul.f32 %v931, 1.442695
        %v934 = vpow.pop %v933
        %v935 = vmul.f32 %v932, 1.442695
        %v936 = vpow.pop %v935
        %v937 = vld [vmem:[#allocation5] sm:$0xff]
        %v938 = vld [vmem:[#allocation5 + $0x8] sm:$0xff]
        %v939 = vmul.f32 %v918, %v937
        %v940 = vmul.f32 %v920, %v938
        %v941 = vsel %vm906, %v934, 0.0
        %942 = vadd.xlane.f32.xlu0 %v941
        %v943 = vpop.xlane.xlu0 %942
        %v944 = vsel %vm906, %v936, 0.0
        %945 = vadd.xlane.f32.xlu0 %v944
        %v946 = vpop.xlane.xlu0 %945
        %v947 = vadd.f32 %v939, %v943
        %v948 = vadd.f32 %v940, %v946
        %vm949 = vcmask 7168
        %950 = vst.msk [vmem:[#allocation5] sm:$0xff] %vm949, %v947
        %951 = vst.msk [vmem:[#allocation5 + $0x8] sm:$0xff] %vm949, %v948
        %v952 = vld [vmem:[#allocation6] sm:$0xff]
        %v953 = vld [vmem:[#allocation6 + $0x8] sm:$0xff]
        %955 = vset.pattern.permute.xlu0 0
        %956 = vperm.xlu0 %955, %v918
        %v957 = vpop.permute.xlu0 %956
        %960 = vset.pattern.permute.xlu0 0
        %961 = vperm.xlu0 %960, %v920
        %v962 = vpop.permute.xlu0 %961
        %v964 = vmul.f32 %v957, %v952
        %v965 = vmul.f32 %v962, %v953
        %v966 = vpack.c.bf16 %v936, %v934
        %v968 = vsel %vm906, %v966, 0
        %970 = vmatprep.subr.bf16.mxu0 0
        %971 = vmatpush1.bf16.msra.mxu0 %v854
        %972 = vmatprep.subr.bf16.mxu0 0
        %973 = vmatpush1.bf16.msra.mxu0 0
        %974 = vmatprep.subr.bf16.mxu0 0
        %975 = vmatpush1.bf16.msra.mxu0 0
        %976 = vmatprep.subr.bf16.mxu0 0
        %977 = vmatpush1.bf16.msra.mxu0 0
        %978 = vmatprep.subr.bf16.mxu0 0
        %979 = vmatpush1.bf16.msra.mxu0 0
        %980 = vmatprep.subr.bf16.mxu0 0
        %981 = vmatpush1.bf16.msra.mxu0 0
        %982 = vmatprep.subr.bf16.mxu0 0
        %983 = vmatpush1.bf16.msra.mxu0 0
        %984 = vmatprep.subr.bf16.mxu0 0
        %985 = vmatpush1.bf16.msra.mxu0 0
        %986 = vmatprep.subr.bf16.mxu0 0
        %987 = vmatpush1.bf16.msra.mxu0 0
        %988 = vmatprep.subr.bf16.mxu0 0
        %989 = vmatpush1.bf16.msra.mxu0 0
        %990 = vmatprep.subr.bf16.mxu0 0
        %991 = vmatpush1.bf16.msra.mxu0 0
        %992 = vmatprep.subr.bf16.mxu0 0
        %993 = vmatpush1.bf16.msra.mxu0 0
        %994 = vmatprep.subr.bf16.mxu0 0
        %995 = vmatpush1.bf16.msra.mxu0 0
        %996 = vmatprep.subr.bf16.mxu0 0
        %997 = vmatpush1.bf16.msra.mxu0 0
        %998 = vmatprep.subr.bf16.mxu0 0
        %999 = vmatpush1.bf16.msra.mxu0 0
        %1000 = vmatprep.subr.bf16.mxu0 0
        %1001 = vmatpush1.bf16.msra.mxu0 0
        %1002 = vmatprep.mubr.bf16.mxu0 0
        %1003 = vmatmul.mubr.bf16.gmra.mrb[0].mxu0 %v968
        %v1004 = vpop.f32.mrb[0].mxu0
        %v1005 = vadd.f32 0.0, %v1004
        %v1006 = vpop.f32.mrb[0].mxu0
        %v1007 = vpop.f32.mrb[0].mxu0
        %v1008 = vadd.f32 0.0, %v1007
        %v1009 = vpop.f32.mrb[0].mxu0
        %1010 = vdwg.mxu0
        %v1011 = vadd.f32 %v964, %v1005
        %v1012 = vadd.f32 %v965, %v1008
        %1013 = vst.msk [vmem:[#allocation6] sm:$0xff] %vm856, %v1011
        %1014 = vst.msk [vmem:[#allocation6 + $0x8] sm:$0xff] %vm856, %v1012
        %1015 = vst.msk [vmem:[#allocation4] sm:$0xff] %vm949, %v913
        %1016 = vst.msk [vmem:[#allocation4 + $0x8] sm:$0xff] %vm949, %v914
        // Predicated region
        $region65: #{attention_forward.1} parent=55 // pred_check
          %p1017 = pneg %p522
        $region66: #{attention_forward.1} parent=55 // pred_check_branch
          %1019 = sbr.rel (%p1017) target = $region68
        $region67: #{attention_forward.1} parent=55 // pred_region
          %v1020 = vld [vmem:[#allocation6] sm:$0xff]
          %v1021 = vld [vmem:[#allocation6 + $0x8] sm:$0xff]
          %v1022 = vld [vmem:[#allocation5] sm:$0xff]
          %v1023 = vld [vmem:[#allocation5 + $0x8] sm:$0xff]
          %v1024 = vrcp.pop %v1022
          %v1025 = vrcp.pop %v1023
          %1027 = vset.pattern.permute.xlu0 0
          %1028 = vperm.xlu0 %1027, %v1024
          %v1029 = vpop.permute.xlu0 %1028
          %1032 = vset.pattern.permute.xlu0 0
          %1033 = vperm.xlu0 %1032, %v1025
          %v1034 = vpop.permute.xlu0 %1033
          %v1036 = vmul.f32 %v1020, %v1029
          %v1037 = vmul.f32 %v1021, %v1034
          %v1038 = vpack.c.bf16 %v1037, %v1036
          %v1039 = vld [vmem:[%s518] sm:$0xf]
          %v1040 = vld [vmem:[%s518 + $0x4] sm:$0xf]
          %v1041 = vld [vmem:[%s518 + $0x8] sm:$0xf]
          %v1042 = vld [vmem:[%s518 + $0xc] sm:$0xf]
          %v1047 = vunpack.c.l.b16 %v1039
          %v1048 = vunpack.c.l.b16 %v1040
          %v1049 = vunpack.c.l.b16 %v1041
          %v1050 = vunpack.c.l.b16 %v1042
          %v1051 = vpack.c.b16 %v1048, %v1047
          %v1052 = vpack.c.b16 %v1050, %v1049
          %v1056 = vsel %vm856, %v1038, 0
          %1058 = vmatprep.subr.bf16.mxu0 0
          %1059 = vmatpush1.bf16.msra.mxu0 %v1051
          %1060 = vmatprep.subr.bf16.mxu0 0
          %1061 = vmatpush1.bf16.msra.mxu0 %v1052
          %1062 = vmatprep.subr.bf16.mxu0 0
          %1063 = vmatpush1.bf16.msra.mxu0 0
          %1064 = vmatprep.subr.bf16.mxu0 0
          %1065 = vmatpush1.bf16.msra.mxu0 0
          %1066 = vmatprep.subr.bf16.mxu0 0
          %1067 = vmatpush1.bf16.msra.mxu0 0
          %1068 = vmatprep.subr.bf16.mxu0 0
          %1069 = vmatpush1.bf16.msra.mxu0 0
          %1070 = vmatprep.subr.bf16.mxu0 0
          %1071 = vmatpush1.bf16.msra.mxu0 0
          %1072 = vmatprep.subr.bf16.mxu0 0
          %1073 = vmatpush1.bf16.msra.mxu0 0
          %1074 = vmatprep.subr.bf16.mxu0 0
          %1075 = vmatpush1.bf16.msra.mxu0 0
          %1076 = vmatprep.subr.bf16.mxu0 0
          %1077 = vmatpush1.bf16.msra.mxu0 0
          %1078 = vmatprep.subr.bf16.mxu0 0
          %1079 = vmatpush1.bf16.msra.mxu0 0
          %1080 = vmatprep.subr.bf16.mxu0 0
          %1081 = vmatpush1.bf16.msra.mxu0 0
          %1082 = vmatprep.subr.bf16.mxu0 0
          %1083 = vmatpush1.bf16.msra.mxu0 0
          %1084 = vmatprep.subr.bf16.mxu0 0
          %1085 = vmatpush1.bf16.msra.mxu0 0
          %1086 = vmatprep.subr.bf16.mxu0 0
          %1087 = vmatpush1.bf16.msra.mxu0 0
          %1088 = vmatprep.subr.bf16.mxu0 0
          %1089 = vmatpush1.bf16.msra.mxu0 0
          %1090 = vmatprep.mubr.bf16.mxu0 0
          %1091 = vmatmul.mubr.bf16.gmra.mrb[0].mxu0 %v1056
          %v1092 = vpop.f32.mrb[0].mxu0
          %v1093 = vadd.f32 0.0, %v1092
          %v1094 = vpop.f32.mrb[0].mxu0
          %v1095 = vpop.f32.mrb[0].mxu0
          %v1096 = vadd.f32 0.0, %v1095
          %v1097 = vpop.f32.mrb[0].mxu0
          %1098 = vdwg.mxu0
          // Predicated region
          $region69: #{attention_forward.1} parent=67 // pred_check
            %p1099 = pneg %p521
          $region70: #{attention_forward.1} parent=67 // pred_check_branch
            %1101 = sbr.rel (%p1099) target = $region72
          $region71: #{attention_forward.1} parent=67 // pred_region
            %v1102 = vld [vmem:[%s8] sm:$0x1]
            %v1104 = vlaneseq
            %v1105 = vshrl.u32 %v1104, 7
            %v1106 = vsub.s32 0, %v1105
            %v1107 = vrot.slane %v1102, %v1106
            %v1109 = vadd.f32 %v1093, %v1107
            %v1110 = vadd.f32 %v1096, %v1107
            %1111 = vst.msk [vmem:[#allocation7] sm:$0xff] %vm745, %v1109
            %1112 = vst.msk [vmem:[#allocation7 + $0x8] sm:$0xff] %vm745, %v1110
          $region72: #{attention_forward.1} parent=67 // pred_fallthru
            _
          %p1113 = scmp.gt.s32.totalorder %s31, 0
          // Predicated region
          $region73: #{attention_forward.1} parent=67 // pred_check
            %p1114 = pneg %p1113
          $region74: #{attention_forward.1} parent=67 // pred_check_branch
            %1116 = sbr.rel (%p1114) target = $region76
          $region75: #{attention_forward.1} parent=67 // pred_region
            %v1117 = vld [vmem:[#allocation7] sm:$0xff]
            %v1118 = vld [vmem:[#allocation7 + $0x8] sm:$0xff]
            %v1119 = vadd.f32 %v1117, %v1093
            %v1120 = vadd.f32 %v1118, %v1096
            %1121 = vst.msk [vmem:[#allocation7] sm:$0xff] %vm745, %v1119
            %1122 = vst.msk [vmem:[#allocation7 + $0x8] sm:$0xff] %vm745, %v1120
          $region76: #{attention_forward.1} parent=67 // pred_fallthru
            _
          %p1123 = scmp.eq.s32.totalorder %s31, 3
          // Predicated region
          $region77: #{attention_forward.1} parent=67 // pred_check
            %p1124 = pneg %p1123
          $region78: #{attention_forward.1} parent=67 // pred_check_branch
            %1126 = sbr.rel (%p1124) target = $region80
          $region79: #{attention_forward.1} parent=67 // pred_region
            %v1127 = vld [vmem:[#allocation7] sm:$0xff]
            %v1128 = vld [vmem:[#allocation7 + $0x8] sm:$0xff]
            %1129 = vst.msk [vmem:[%s472] sm:$0xff] %vm745, %v1127
            %1130 = vst.msk [vmem:[%s472 + $0x8] sm:$0xff] %vm745, %v1128
          $region80: #{attention_forward.1} parent=67 // pred_fallthru
            _
        $region68: #{attention_forward.1} parent=55 // pred_fallthru
          _
        %s1131 = sand.u32 %s292, 1
        %s1132 = scalar_lea.sflag [#allocation9], %s1131
        %s1133 = sand.u32 %s292, 1
        %s1134 = smul.addr %s1133, 16
        %s1135 = scalar_lea.vmem [#allocation8], %s1134
        // Predicated region
        $region81: #{attention_forward.1} parent=55 // pred_check
          %p1136 = pneg %p302
        $region82: #{attention_forward.1} parent=55 // pred_check_branch
          %1138 = sbr.rel (%p1136) target = $region84
        $region83: #{attention_forward.1} parent=55 // pred_region
          %s1139 = smul.u32 2, %s30
          %s1141 = ssub.s32 256, 256
          %1142 = vsyncadd %s1132, %s1141
          %s1143 = smul.addr %s29, 2
          %s1144 = sadd.s32 %s1139, %s1143
          %s1145 = smul.addr %s1144, 128
          %s1146 = scalar_lea.hbm %s9, %s1145
          %s1147 = sshll.u32 %s1135, 4
          %s1148 = int_to_ptr.vmem [resolvable:$true] %s1147
          %1153 = dma.vmem_to_hbm [thread:$0]  %s1148, 256, %s1146, %s1132, 128, 128, 8
        $region84: #{attention_forward.1} parent=55 // pred_fallthru
          _
      $region56: #{attention_forward.1} parent=5 // pred_fallthru
        _
      %p1154 = scmp.le.s32.totalorder 2, %s18
      // Predicated region
      $region85: #{attention_forward.1} parent=5 // pred_check
        %p1155 = pneg %p1154
      $region86: #{attention_forward.1} parent=5 // pred_check_branch
        %1157 = sbr.rel (%p1155) target = $region88
      $region87: #{attention_forward.1} parent=5 // pred_region
        %s1158 = ssub.s32 %s18, 2
        // Predicated region
        $region89: #{attention_forward.1} parent=87 // pred_check
          %p1159 = pneg %p308
        $region90: #{attention_forward.1} parent=87 // pred_check_branch
          %1161 = sbr.rel (%p1159) target = $region92
        $region91: #{attention_forward.1} parent=87 // pred_region
          %s1162 = sand.u32 %s293, 1
          %s1163 = scalar_lea.sflag [#allocation9], %s1162
          %s1164 = sand.u32 %s293, 1
          %s1165 = smul.addr %s1164, 16
          %s1166 = scalar_lea.vmem [#allocation8], %s1165
          %1167 = dma.done %s1163, 256
        $region92: #{attention_forward.1} parent=87 // pred_fallthru
          _
      $region88: #{attention_forward.1} parent=5 // pred_fallthru
        _
    $region6: #{attention_forward.1} parent=1 // loop_footer
      %s22 = sadd.s32 1, %s18
    $region7: #{attention_forward.1} parent=1 // loop_footer_branch
      %17 = sbr.rel target = $region3
    $region8: #{attention_forward.1} parent=1 // loop_exit
      _
    %1168 = vsyncpa [#allocation9], 1
    %s1169 = scalar_lea.sflag [#allocation9], 1
    %1170 = vsyncpa %s1169, 1

</llo_original>
